<compile_context>
chip_gen: v6e
topology: v6e:2x2x1
jax: 0.10.0
libtpu: 0.0.40
codegen_flags: <defaults>
</compile_context>

<pallas_src>
import functools

import jax
import jax.numpy as jnp
import numpy as np
from jax.experimental import pallas as pl
from jax.experimental.pallas import tpu as pltpu

NORM_CHANNELS = 8
EPS = 1e-5
_HALO = 128          # halo width (next-block columns) covering cross-tile conv taps


# --------------------------------------------------------------------------- kernels
def _conv_tile(cur_ref, halo_ref, w_ref, tap_ref, *, S, K, C_in, TL):
    """One strided-Conv1d output tile via a single fused MXU matmul.

    cur_ref : (1, S, C_in, TL)    polyphase input block for output cols [l*TL, l*TL+TL)
    halo_ref: (1, S, C_in, 128)   first columns of the *next* block (cross-tile taps)
    w_ref   : (C_out, K*C_in)     flattened conv weight
    tap_ref : (K*C_in, TL)        VMEM scratch; row k*C_in+c, col t = x[c, (l*TL+t)*S+k]
    Returns the f32 conv tile (C_out, TL), bias NOT added.
    """
    for k in range(K):
        r, q = k % S, k // S                      # polyphase residue / static shift
        lo, hi = k * C_in, (k + 1) * C_in
        if q == 0:
            tap_ref[lo:hi, :] = cur_ref[0, r]
        else:
            tap_ref[lo:hi, :TL - q] = cur_ref[0, r, :, q:]
            tap_ref[lo:hi, TL - q:] = halo_ref[0, r, :, :q]
    return jnp.dot(w_ref[...], tap_ref[...], preferred_element_type=jnp.float32)


def _group_affine(s1, s2, p_ref, gm_ref, gmt_ref, inv_cnt):
    """Fold GroupNorm stats (per-channel sums of the *biased* conv output) + gamma/beta
    into a per-channel (scale, shift) such that  norm(y) = y*scale + shift."""
    g1 = jnp.dot(gmt_ref[...], s1, preferred_element_type=jnp.float32)     # (G, 1)
    g2 = jnp.dot(gmt_ref[...], s2, preferred_element_type=jnp.float32)     # (G, 1)
    mean_g = g1 * inv_cnt
    # Clamp: single-pass E[x^2] - mean^2 can cancel slightly negative.
    var_g = jnp.maximum(g2 * inv_cnt - mean_g * mean_g, 0.0)
    inv_g = jax.lax.rsqrt(var_g + EPS)
    mean_c = jnp.dot(gm_ref[...], mean_g, preferred_element_type=jnp.float32)
    inv_c = jnp.dot(gm_ref[...], inv_g, preferred_element_type=jnp.float32)
    gamma = p_ref[:, 1:2]
    beta = p_ref[:, 2:3]
    scale = inv_c * gamma
    shift = beta - mean_c * scale
    return scale, shift


def _fused_kernel(cur_ref, halo_ref, w_ref, p_ref, gm_ref, gmt_ref, o_ref,
                  tap_ref, cache_ref, s1_ref, s2_ref, *,
                  S, K, C_in, TL, n_l, L_out, inv_cnt):
    """Single fused pass: conv tile -> stats accumulation (+ raw tile cached in VMEM),
    then on the last L tile: fold stats into (scale, shift) and write the whole
    normalized/ReLU'd output block (resident per batch element) once."""
    l = pl.program_id(1)

    @pl.when(l == 0)
    def _init():
        s1_ref[...] = jnp.zeros_like(s1_ref)
        s2_ref[...] = jnp.zeros_like(s2_ref)

    acc = _conv_tile(cur_ref, halo_ref, w_ref, tap_ref, S=S, K=K, C_in=C_in, TL=TL)
    acc = acc + p_ref[:, 0:1]                     # + bias, broadcast along L lanes

    w_last = L_out - (n_l - 1) * TL               # static width of the last tile

    if n_l > 1:
        @pl.when(l < n_l - 1)
        def _steady():
            # Steady state: full tile, no masking.
            cache_ref[l] = acc.astype(cache_ref.dtype)
            s1_ref[...] = s1_ref[...] + jnp.sum(acc, axis=1, keepdims=True)
            s2_ref[...] = s2_ref[...] + jnp.sum(acc * acc, axis=1, keepdims=True)

    @pl.when(l == n_l - 1)
    def _finalize():
        acc_t = acc[:, :w_last]                   # static slice drops padded columns
        s1 = s1_ref[...] + jnp.sum(acc_t, axis=1, keepdims=True)
        s2 = s2_ref[...] + jnp.sum(acc_t * acc_t, axis=1, keepdims=True)
        scale, shift = _group_affine(s1, s2, p_ref, gm_ref, gmt_ref, inv_cnt)
        # Statically-unrolled normalize + ReLU of the cached raw conv tiles straight
        # into the per-batch resident output block (one HBM write per batch element).
        for t in range(n_l):
            if t == n_l - 1:
                raw, width = acc_t, w_last        # reuse the f32 tile just computed
            else:
                raw, width = cache_ref[t].astype(jnp.float32), TL
            o_ref[0, :, t * TL:t * TL + width] = jnp.maximum(
                raw * scale + shift, 0.0).astype(o_ref.dtype)


def _stats_kernel(cur_ref, halo_ref, w_ref, p_ref, gm_ref, gmt_ref, aff_ref,
                  tap_ref, s1_ref, s2_ref, *,
                  S, K, C_in, TL, n_l, L_out, inv_cnt):
    """Fallback pass 1: GroupNorm statistics of the conv output -> per-channel
    (scale, shift) with the conv bias folded in (pass 2 recomputes the conv bias-free)."""
    l = pl.program_id(1)

    @pl.when(l == 0)
    def _init():
        s1_ref[...] = jnp.zeros_like(s1_ref)
        s2_ref[...] = jnp.zeros_like(s2_ref)

    acc = _conv_tile(cur_ref, halo_ref, w_ref, tap_ref, S=S, K=K, C_in=C_in, TL=TL)
    acc = acc + p_ref[:, 0:1]

    w_last = L_out - (n_l - 1) * TL

    if n_l > 1:
        @pl.when(l < n_l - 1)
        def _steady():
            s1_ref[...] = s1_ref[...] + jnp.sum(acc, axis=1, keepdims=True)
            s2_ref[...] = s2_ref[...] + jnp.sum(acc * acc, axis=1, keepdims=True)

    @pl.when(l == n_l - 1)
    def _finalize():
        acc_t = acc[:, :w_last]
        s1 = s1_ref[...] + jnp.sum(acc_t, axis=1, keepdims=True)
        s2 = s2_ref[...] + jnp.sum(acc_t * acc_t, axis=1, keepdims=True)
        scale, shift = _group_affine(s1, s2, p_ref, gm_ref, gmt_ref, inv_cnt)
        shift = shift + p_ref[:, 0:1] * scale     # fold the conv bias for pass 2
        # TODO(synk): a lane-dense (N, 2, C_out) affine layout would avoid these two
        #             masked 2-lane stores; negligible (once per batch element).
        aff_ref[0, :, 0:1] = scale
        aff_ref[0, :, 1:2] = shift


def _apply_kernel(cur_ref, halo_ref, w_ref, aff_ref, o_ref, tap_ref, *,
                  S, K, C_in, TL, w_blk):
    """Fallback pass 2: conv tile -> fused affine -> ReLU -> lane-dense blocked store."""
    acc = _conv_tile(cur_ref, halo_ref, w_ref, tap_ref, S=S, K=K, C_in=C_in, TL=TL)
    scale = aff_ref[0, :, 0:1]
    shift = aff_ref[0, :, 1:2]
    res = jnp.maximum(acc * scale + shift, 0.0)
    o_ref[0] = res[:, :w_blk].astype(o_ref.dtype)


# --------------------------------------------------------------------------- wrapper
def _vmem_limit_bytes():
    """Generation-aware VMEM limit: ~3/4 of physical VMEM, capped at 96 MiB on
    128 MiB parts (v5e/v6e); falls back to a v7x-safe 48 MiB if the query fails."""
    cap = 64 << 20
    try:
        cap = int(pltpu.get_tpu_info().vmem_capacity_bytes)
    except Exception:
        pass
    return int(max(32 << 20, min(cap * 3 // 4, 96 << 20)))


def _choose_tile_l(l_out, kc, c_out, s, c_in, in_bytes, tile_budget, max_tile_l):
    """Largest 128-multiple output-L (lane) tile whose per-step working set fits the
    per-generation tile budget; bigger tiles amortize the ~0.35us/grid-step overhead
    and keep output stores lane-dense."""
    per_col = 2 * (kc + s * c_in) * in_bytes + 16 * c_out   # tap + input blocks + f32 temps
    tl = tile_budget // max(per_col, 1)
    tl = max(128, min(int(max_tile_l), tl))
    tl = (tl // 128) * 128
    tl = min(tl, -(-l_out // 128) * 128)
    return max(128, tl)


@functools.partial(jax.jit, static_argnames=("stride", "max_tile_l", "compute_dtype",
                                             "out_dtype", "allow_fused"))
def conv_layer_forward(x, w, b, gamma, beta, *, stride, max_tile_l=2048,
                       compute_dtype=jnp.bfloat16, out_dtype=jnp.float32,
                       allow_fused=True):
    """relu(GroupNorm(Conv1d(x, stride))) -- ConvLayer.forward, transpose=False.

    x: (N, C_in, L_in) f32 (PyTorch NCL), w: (C_out, C_in, K); returns (N, C_out, L_out).
    """
    N, C_in, L_in = x.shape
    C_out, c_in_w, K = w.shape
    assert c_in_w == C_in
    S = int(stride)
    assert L_in >= K
    assert C_out % NORM_CHANNELS == 0
    G = C_out // NORM_CHANNELS
    L_out = (L_in - K) // S + 1
    KC = K * C_in
    assert (K - 1) // S < _HALO, "conv taps may not span more than 128 polyphase cols"

    in_b = jnp.dtype(compute_dtype).itemsize
    out_b = jnp.dtype(out_dtype).itemsize

    vmem_limit = _vmem_limit_bytes()
    budget = vmem_limit - (6 << 20)                    # compiler/pipeline headroom
    TL = _choose_tile_l(L_out, KC, C_out, S, C_in, in_b, budget // 3, max_tile_l)
    n_l = -(-L_out // TL)
    Lp = (n_l + 1) * TL                                # +1 tile so the halo never OOBs

    # ---- host prep: stride-S polyphase view (NO K-fold duplication) --------------
    # xp[n, r, c, j] = x[n, c, j*S + r]; one fused cast/pad/transpose pass over x.
    xc = x.astype(compute_dtype)
    need = Lp * S
    if need > L_in:
        xc = jnp.pad(xc, ((0, 0), (0, 0), (0, need - L_in)))
    elif need < L_in:
        xc = xc[:, :, :need]
    xp = jnp.transpose(xc.reshape(N, C_in, Lp, S), (0, 3, 1, 2))       # (N, S, C_in, Lp)

    wmat = jnp.transpose(w, (0, 2, 1)).reshape(C_out, KC).astype(compute_dtype)
    params = jnp.stack([b, gamma, beta], axis=1).astype(jnp.float32)   # (C_out, 3)
    gm = (jnp.arange(C_out)[:, None] // NORM_CHANNELS
          == jnp.arange(G)[None, :]).astype(jnp.float32)               # (C_out, G)
    gmt = jnp.transpose(gm)                                            # (G, C_out)

    inv_cnt = 1.0 / float(L_out * NORM_CHANNELS)
    statics = dict(S=S, K=K, C_in=C_in, TL=TL, n_l=n_l, L_out=L_out, inv_cnt=inv_cnt)

    cur_spec = pl.BlockSpec((1, S, C_in, TL), lambda n, l: (n, 0, 0, l))
    halo_spec = pl.BlockSpec((1, S, C_in, _HALO),
                             lambda n, l: (n, 0, 0, (l + 1) * (TL // _HALO)))
    w_spec = pl.BlockSpec((C_out, KC), lambda n, l: (0, 0))
    p_spec = pl.BlockSpec((C_out, 3), lambda n, l: (0, 0))
    gm_spec = pl.BlockSpec((C_out, G), lambda n, l: (0, 0))
    gmt_spec = pl.BlockSpec((G, C_out), lambda n, l: (0, 0))

    # ---- can the whole per-batch-element op be fused into one pass? ---------------
    blocks_b = 2 * S * C_in * (TL + _HALO) * in_b + 2 * C_out * KC * in_b
    cache_b = max(n_l - 1, 1) * C_out * TL * in_b          # raw-conv tile cache
    out_res_b = 2 * C_out * L_out * out_b                  # resident output block
    tile_tmp_b = KC * TL * in_b + 4 * C_out * TL * 4
    fused_need = blocks_b + cache_b + out_res_b + tile_tmp_b + (2 << 20)
    use_fused = bool(allow_fused) and fused_need <= budget and n_l <= 64

    if use_fused:
        return pl.pallas_call(
            functools.partial(_fused_kernel, **statics),
            out_shape=jax.ShapeDtypeStruct((N, C_out, L_out), out_dtype),
            grid_spec=pltpu.PrefetchScalarGridSpec(
                num_scalar_prefetch=0,
                grid=(N, n_l),
                in_specs=[cur_spec, halo_spec, w_spec, p_spec, gm_spec, gmt_spec],
                out_specs=pl.BlockSpec((1, C_out, L_out), lambda n, l: (n, 0, 0)),
                scratch_shapes=[
                    pltpu.VMEM((KC, TL), compute_dtype),
                    pltpu.VMEM((max(n_l - 1, 1), C_out, TL), compute_dtype),
                    pltpu.VMEM((C_out, 1), jnp.float32),
                    pltpu.VMEM((C_out, 1), jnp.float32)]),
            compiler_params=pltpu.CompilerParams(
                dimension_semantics=("parallel", "arbitrary"),
                vmem_limit_bytes=vmem_limit),
        )(xp, xp, wmat, params, gm, gmt)

    # ---- fallback: two streamed passes (stats -> affine, then apply) --------------
    affine = pl.pallas_call(
        functools.partial(_stats_kernel, **statics),
        out_shape=jax.ShapeDtypeStruct((N, C_out, 2), jnp.float32),
        grid_spec=pltpu.PrefetchScalarGridSpec(
            num_scalar_prefetch=0,
            grid=(N, n_l),
            in_specs=[cur_spec, halo_spec, w_spec, p_spec, gm_spec, gmt_spec],
            out_specs=pl.BlockSpec((1, C_out, 2), lambda n, l: (n, 0, 0)),
            scratch_shapes=[pltpu.VMEM((KC, TL), compute_dtype),
                            pltpu.VMEM((C_out, 1), jnp.float32),
                            pltpu.VMEM((C_out, 1), jnp.float32)]),
        compiler_params=pltpu.CompilerParams(
            dimension_semantics=("parallel", "arbitrary"),
            vmem_limit_bytes=vmem_limit),
    )(xp, xp, wmat, params, gm, gmt)

    w_blk = TL if n_l > 1 else L_out
    out = pl.pallas_call(
        functools.partial(_apply_kernel, S=S, K=K, C_in=C_in, TL=TL, w_blk=w_blk),
        out_shape=jax.ShapeDtypeStruct((N, C_out, L_out), out_dtype),
        grid_spec=pltpu.PrefetchScalarGridSpec(
            num_scalar_prefetch=0,
            grid=(N, n_l),
            in_specs=[cur_spec, halo_spec, w_spec,
                      pl.BlockSpec((1, C_out, 2), lambda n, l: (n, 0, 0))],
            out_specs=pl.BlockSpec((1, C_out, w_blk), lambda n, l: (n, 0, l)),
            scratch_shapes=[pltpu.VMEM((KC, TL), compute_dtype)]),
        compiler_params=pltpu.CompilerParams(
            dimension_semantics=("parallel", "parallel"),
            vmem_limit_bytes=vmem_limit),
    )(xp, xp, wmat, affine)
    return out


# --------------------------------------------------------------------------- reference
def _ref_forward(x, w, b, gamma, beta, stride):
    """Pure-JAX reference mirroring F.relu(GroupNorm(Conv1d(x)))."""
    N, C_in, L_in = x.shape
    C_out, _, K = w.shape
    L_out = (L_in - K) // stride + 1
    idx = jnp.arange(L_out)[:, None] * stride + jnp.arange(K)[None, :]
    patches = x[:, :, idx]                                        # (N, C_in, L_out, K)
    y = jnp.einsum('nclk,ock->nol', patches, w) + b[None, :, None]
    G = C_out // NORM_CHANNELS
    yg = y.reshape(N, G, NORM_CHANNELS, L_out)
    mean = yg.mean(axis=(2, 3), keepdims=True)
    var = yg.var(axis=(2, 3), keepdims=True)
    yn = (yg - mean) * jax.lax.rsqrt(var + EPS)
    yn = yn.reshape(N, C_out, L_out) * gamma[None, :, None] + beta[None, :, None]
    return jnp.maximum(yn, 0.0)


if __name__ == "__main__":
    def _run_case(N, C_in, C_out, K, S, L_in, *, compute_dtype, out_dtype, max_tile_l,
                  allow_fused, tol):
        key = jax.random.PRNGKey(0)
        k1, k2, k3, k4, k5 = jax.random.split(key, 5)
        bound = 1.0 / np.sqrt(C_in * K)
        w = jax.random.uniform(k1, (C_out, C_in, K), jnp.float32, -bound, bound)
        b = jax.random.uniform(k2, (C_out,), jnp.float32, -bound, bound)
        gamma = jax.random.uniform(k3, (C_out,), jnp.float32, 0.5, 1.5)
        beta = jax.random.uniform(k4, (C_out,), jnp.float32, -0.5, 0.5)
        x = jax.random.normal(k5, (N, C_in, L_in), jnp.float32)

        out = conv_layer_forward(x, w, b, gamma, beta, stride=S,
                                 max_tile_l=max_tile_l, compute_dtype=compute_dtype,
                                 out_dtype=out_dtype, allow_fused=allow_fused)
        out = jax.block_until_ready(out)
        ref = _ref_forward(x, w, b, gamma, beta, S)
        np.testing.assert_allclose(np.asarray(out, dtype=np.float32),
                                   np.asarray(ref), rtol=tol, atol=tol)

    # Case 1: ConvLayer(n_inputs=4, n_outputs=16, kernel_size=5, stride=2) at small
    # shapes; exact f32 compute path, single L tile, fused pass.
    _run_case(2, 4, 16, 5, 2, 21, compute_dtype=jnp.float32, out_dtype=jnp.float32,
              max_tile_l=2048, allow_fused=True, tol=1e-3)
    # Case 2: longer input, bf16 MXU path, multiple L tiles on the fused single pass
    # (exercises cross-tile stats + VMEM raw-tile cache + in-place finalize).
    _run_case(2, 4, 16, 5, 2, 1027, compute_dtype=jnp.bfloat16, out_dtype=jnp.float32,
              max_tile_l=128, allow_fused=True, tol=3e-2)
    # Case 3: same shapes on the two-pass fallback (stats kernel + apply kernel).
    _run_case(2, 4, 16, 5, 2, 1027, compute_dtype=jnp.bfloat16, out_dtype=jnp.float32,
              max_tile_l=128, allow_fused=False, tol=3e-2)
    # Case 4: Wave-U-Net-like kernel_size=15, stride=1, bf16 output, partial last tile.
    _run_case(1, 8, 16, 15, 1, 300, compute_dtype=jnp.bfloat16, out_dtype=jnp.bfloat16,
              max_tile_l=128, allow_fused=True, tol=4e-2)
    print("KERNEL_OK")
</pallas_src>

<mosaic_0001>
module attributes {stable_mosaic.version = 11 : i64} {
  func.func @_fused_kernel(%arg0: i32, %arg1: i32, %arg2: memref<1x2x4x128xf32, #tpu.memory_space<vmem>>, %arg3: memref<1x2x4x128xf32, #tpu.memory_space<vmem>>, %arg4: memref<16x20xf32, #tpu.memory_space<vmem>>, %arg5: memref<16x3xf32, #tpu.memory_space<vmem>>, %arg6: memref<16x2xf32, #tpu.memory_space<vmem>>, %arg7: memref<2x16xf32, #tpu.memory_space<vmem>>, %arg8: memref<1x16x9xf32, #tpu.memory_space<vmem>>, %arg9: memref<20x128xf32, #tpu.memory_space<vmem>>, %arg10: memref<1x16x128xf32, #tpu.memory_space<vmem>>, %arg11: memref<16x1xf32, #tpu.memory_space<vmem>>, %arg12: memref<16x1xf32, #tpu.memory_space<vmem>>) attributes {dimension_semantics = [#tpu.dimension_semantics<parallel>, #tpu.dimension_semantics<arbitrary>], iteration_bounds = array<i64: 2, 1>, scalar_prefetch = 0 : i64, scratch_operands = 4 : i64, tpu.core_type = #tpu.core_type<tc>, window_params = [{transform_indices = @transform_0, window_bounds = array<i64: 1, 2, 4, 128>}, {transform_indices = @transform_1, window_bounds = array<i64: 1, 2, 4, 128>}, {pipeline_mode = #tpu.pipeline_mode<synchronous>, transform_indices = @transform_2, window_bounds = array<i64: 16, 20>}, {pipeline_mode = #tpu.pipeline_mode<synchronous>, transform_indices = @transform_3, window_bounds = array<i64: 16, 3>}, {pipeline_mode = #tpu.pipeline_mode<synchronous>, transform_indices = @transform_4, window_bounds = array<i64: 16, 2>}, {pipeline_mode = #tpu.pipeline_mode<synchronous>, transform_indices = @transform_5, window_bounds = array<i64: 2, 16>}, {transform_indices = @transform_6, window_bounds = array<i64: 1, 16, 9>}]} {
    %c0_i32 = arith.constant 0 : i32
    %0 = arith.cmpi eq, %arg1, %c0_i32 : i32
    %1 = arith.extui %0 : i1 to i32
    %c0_i32_0 = arith.constant 0 : i32
    %2 = arith.cmpi ne, %1, %c0_i32_0 : i32
    scf.if %2 {
      %cst_48 = arith.constant 0.000000e+00 : f32
      %36 = vector.broadcast %cst_48 : f32 to vector<16x1xf32>
      %c0_49 = arith.constant 0 : index
      %c0_50 = arith.constant 0 : index
      %37 = vector.load %arg11[%c0_49, %c0_50] : memref<16x1xf32, #tpu.memory_space<vmem>>, vector<16x1xf32>
      tpu.vector_store %arg11[%c0_49, %c0_50], %36 {strides = array<i32>} : memref<16x1xf32, #tpu.memory_space<vmem>>, vector<16x1xf32>,
      %cst_51 = arith.constant 0.000000e+00 : f32
      %38 = vector.broadcast %cst_51 : f32 to vector<16x1xf32>
      %c0_52 = arith.constant 0 : index
      %c0_53 = arith.constant 0 : index
      %39 = vector.load %arg12[%c0_52, %c0_53] : memref<16x1xf32, #tpu.memory_space<vmem>>, vector<16x1xf32>
      tpu.vector_store %arg12[%c0_52, %c0_53], %38 {strides = array<i32>} : memref<16x1xf32, #tpu.memory_space<vmem>>, vector<16x1xf32>,
    } else {
    }
    %c0 = arith.constant 0 : index
    %c0_1 = arith.constant 0 : index
    %c0_2 = arith.constant 0 : index
    %c0_3 = arith.constant 0 : index
    %3 = vector.load %arg2[%c0, %c0_1, %c0_2, %c0_3] : memref<1x2x4x128xf32, #tpu.memory_space<vmem>>, vector<1x1x4x128xf32>
    %4 = vector.shape_cast %3 : vector<1x1x4x128xf32> to vector<4x128xf32>
    %c0_4 = arith.constant 0 : index
    %c0_5 = arith.constant 0 : index
    %5 = vector.load %arg9[%c0_4, %c0_5] : memref<20x128xf32, #tpu.memory_space<vmem>>, vector<4x128xf32>
    tpu.vector_store %arg9[%c0_4, %c0_5], %4 {strides = array<i32>} : memref<20x128xf32, #tpu.memory_space<vmem>>, vector<4x128xf32>,
    %c0_6 = arith.constant 0 : index
    %c1 = arith.constant 1 : index
    %c0_7 = arith.constant 0 : index
    %c0_8 = arith.constant 0 : index
    %6 = vector.load %arg2[%c0_6, %c1, %c0_7, %c0_8] : memref<1x2x4x128xf32, #tpu.memory_space<vmem>>, vector<1x1x4x128xf32>
    %7 = vector.shape_cast %6 : vector<1x1x4x128xf32> to vector<4x128xf32>
    %c4 = arith.constant 4 : index
    %c0_9 = arith.constant 0 : index
    %8 = vector.load %arg9[%c4, %c0_9] : memref<20x128xf32, #tpu.memory_space<vmem>>, vector<4x128xf32>
    tpu.vector_store %arg9[%c4, %c0_9], %7 {strides = array<i32>} : memref<20x128xf32, #tpu.memory_space<vmem>>, vector<4x128xf32>,
    %c0_10 = arith.constant 0 : index
    %c0_11 = arith.constant 0 : index
    %c0_12 = arith.constant 0 : index
    %c1_13 = arith.constant 1 : index
    %9 = vector.load %arg2[%c0_10, %c0_11, %c0_12, %c1_13] : memref<1x2x4x128xf32, #tpu.memory_space<vmem>>, vector<1x1x4x127xf32>
    %10 = vector.shape_cast %9 : vector<1x1x4x127xf32> to vector<4x127xf32>
    %c8 = arith.constant 8 : index
    %c0_14 = arith.constant 0 : index
    %11 = vector.load %arg9[%c8, %c0_14] : memref<20x128xf32, #tpu.memory_space<vmem>>, vector<4x127xf32>
    tpu.vector_store %arg9[%c8, %c0_14], %10 {strides = array<i32>} : memref<20x128xf32, #tpu.memory_space<vmem>>, vector<4x127xf32>,
    %c0_15 = arith.constant 0 : index
    %c0_16 = arith.constant 0 : index
    %c0_17 = arith.constant 0 : index
    %c0_18 = arith.constant 0 : index
    %12 = vector.load %arg3[%c0_15, %c0_16, %c0_17, %c0_18] : memref<1x2x4x128xf32, #tpu.memory_space<vmem>>, vector<1x1x4x1xf32>
    %13 = vector.shape_cast %12 : vector<1x1x4x1xf32> to vector<4x1xf32>
    %c8_19 = arith.constant 8 : index
    %c127 = arith.constant 127 : index
    %14 = vector.load %arg9[%c8_19, %c127] : memref<20x128xf32, #tpu.memory_space<vmem>>, vector<4x1xf32>
    tpu.vector_store %arg9[%c8_19, %c127], %13 {strides = array<i32>} : memref<20x128xf32, #tpu.memory_space<vmem>>, vector<4x1xf32>,
    %c0_20 = arith.constant 0 : index
    %c1_21 = arith.constant 1 : index
    %c0_22 = arith.constant 0 : index
    %c1_23 = arith.constant 1 : index
    %15 = vector.load %arg2[%c0_20, %c1_21, %c0_22, %c1_23] : memref<1x2x4x128xf32, #tpu.memory_space<vmem>>, vector<1x1x4x127xf32>
    %16 = vector.shape_cast %15 : vector<1x1x4x127xf32> to vector<4x127xf32>
    %c12 = arith.constant 12 : index
    %c0_24 = arith.constant 0 : index
    %17 = vector.load %arg9[%c12, %c0_24] : memref<20x128xf32, #tpu.memory_space<vmem>>, vector<4x127xf32>
    tpu.vector_store %arg9[%c12, %c0_24], %16 {strides = array<i32>} : memref<20x128xf32, #tpu.memory_space<vmem>>, vector<4x127xf32>,
    %c0_25 = arith.constant 0 : index
    %c1_26 = arith.constant 1 : index
    %c0_27 = arith.constant 0 : index
    %c0_28 = arith.constant 0 : index
    %18 = vector.load %arg3[%c0_25, %c1_26, %c0_27, %c0_28] : memref<1x2x4x128xf32, #tpu.memory_space<vmem>>, vector<1x1x4x1xf32>
    %19 = vector.shape_cast %18 : vector<1x1x4x1xf32> to vector<4x1xf32>
    %c12_29 = arith.constant 12 : index
    %c127_30 = arith.constant 127 : index
    %20 = vector.load %arg9[%c12_29, %c127_30] : memref<20x128xf32, #tpu.memory_space<vmem>>, vector<4x1xf32>
    tpu.vector_store %arg9[%c12_29, %c127_30], %19 {strides = array<i32>} : memref<20x128xf32, #tpu.memory_space<vmem>>, vector<4x1xf32>,
    %c0_31 = arith.constant 0 : index
    %c0_32 = arith.constant 0 : index
    %c0_33 = arith.constant 0 : index
    %c2 = arith.constant 2 : index
    %21 = vector.load %arg2[%c0_31, %c0_32, %c0_33, %c2] : memref<1x2x4x128xf32, #tpu.memory_space<vmem>>, vector<1x1x4x126xf32>
    %22 = vector.shape_cast %21 : vector<1x1x4x126xf32> to vector<4x126xf32>
    %c16 = arith.constant 16 : index
    %c0_34 = arith.constant 0 : index
    %23 = vector.load %arg9[%c16, %c0_34] : memref<20x128xf32, #tpu.memory_space<vmem>>, vector<4x126xf32>
    tpu.vector_store %arg9[%c16, %c0_34], %22 {strides = array<i32>} : memref<20x128xf32, #tpu.memory_space<vmem>>, vector<4x126xf32>,
    %c0_35 = arith.constant 0 : index
    %c0_36 = arith.constant 0 : index
    %c0_37 = arith.constant 0 : index
    %c0_38 = arith.constant 0 : index
    %24 = vector.load %arg3[%c0_35, %c0_36, %c0_37, %c0_38] : memref<1x2x4x128xf32, #tpu.memory_space<vmem>>, vector<1x1x4x2xf32>
    %25 = vector.shape_cast %24 : vector<1x1x4x2xf32> to vector<4x2xf32>
    %c16_39 = arith.constant 16 : index
    %c126 = arith.constant 126 : index
    %26 = vector.load %arg9[%c16_39, %c126] : memref<20x128xf32, #tpu.memory_space<vmem>>, vector<4x2xf32>
    tpu.vector_store %arg9[%c16_39, %c126], %25 {strides = array<i32>} : memref<20x128xf32, #tpu.memory_space<vmem>>, vector<4x2xf32>,
    %c0_40 = arith.constant 0 : index
    %c0_41 = arith.constant 0 : index
    %27 = vector.load %arg4[%c0_40, %c0_41] : memref<16x20xf32, #tpu.memory_space<vmem>>, vector<16x20xf32>
    %c0_42 = arith.constant 0 : index
    %c0_43 = arith.constant 0 : index
    %28 = vector.load %arg9[%c0_42, %c0_43] : memref<20x128xf32, #tpu.memory_space<vmem>>, vector<20x128xf32>
    %cst = arith.constant dense<0.000000e+00> : vector<16x128xf32>
    %29 = tpu.matmul %27, %28, %cst {dimension_numbers = #tpu.dot_dimension_numbers<[1], [0], [0], [1], [0, 0, 1, 1], [], []>} : vector<16x20xf32>, vector<20x128xf32>, vector<16x128xf32> -> vector<16x128xf32>
    %c0_44 = arith.constant 0 : index
    %c0_45 = arith.constant 0 : index
    %30 = vector.load %arg5[%c0_44, %c0_45] : memref<16x3xf32, #tpu.memory_space<vmem>>, vector<16x1xf32>
    %31 = vector.broadcast %30 : vector<16x1xf32> to vector<16x128xf32>
    %32 = arith.addf %29, %31 : vector<16x128xf32>
    %c0_i32_46 = arith.constant 0 : i32
    %33 = arith.cmpi eq, %arg1, %c0_i32_46 : i32
    %34 = arith.extui %33 : i1 to i32
    %c0_i32_47 = arith.constant 0 : i32
    %35 = arith.cmpi ne, %34, %c0_i32_47 : i32
    scf.if %35 {
      %36 = vector.extract_strided_slice %32 {offsets = [0, 0], sizes = [16, 9], strides = [1, 1]} : vector<16x128xf32> to vector<16x9xf32>
      %c0_48 = arith.constant 0 : index
      %c0_49 = arith.constant 0 : index
      %37 = vector.load %arg11[%c0_48, %c0_49] : memref<16x1xf32, #tpu.memory_space<vmem>>, vector<16x1xf32>
      %cst_50 = arith.constant dense<0.000000e+00> : vector<16xf32>
      %38 = vector.multi_reduction <add>, %36, %cst_50 [1] : vector<16x9xf32> to vector<16xf32>
      %39 = vector.shape_cast %38 : vector<16xf32> to vector<16x1xf32>
      %40 = arith.addf %37, %39 : vector<16x1xf32>
      %c0_51 = arith.constant 0 : index
      %c0_52 = arith.constant 0 : index
      %41 = vector.load %arg12[%c0_51, %c0_52] : memref<16x1xf32, #tpu.memory_space<vmem>>, vector<16x1xf32>
      %42 = arith.mulf %36, %36 : vector<16x9xf32>
      %cst_53 = arith.constant dense<0.000000e+00> : vector<16xf32>
      %43 = vector.multi_reduction <add>, %42, %cst_53 [1] : vector<16x9xf32> to vector<16xf32>
      %44 = vector.shape_cast %43 : vector<16xf32> to vector<16x1xf32>
      %45 = arith.addf %41, %44 : vector<16x1xf32>
      %c0_54 = arith.constant 0 : index
      %c0_55 = arith.constant 0 : index
      %46 = vector.load %arg7[%c0_54, %c0_55] : memref<2x16xf32, #tpu.memory_space<vmem>>, vector<2x16xf32>
      %cst_56 = arith.constant dense<0.000000e+00> : vector<2x1xf32>
      %47 = tpu.matmul %46, %40, %cst_56 {dimension_numbers = #tpu.dot_dimension_numbers<[1], [0], [0], [1], [0, 0, 1, 1], [], []>} : vector<2x16xf32>, vector<16x1xf32>, vector<2x1xf32> -> vector<2x1xf32>
      %c0_57 = arith.constant 0 : index
      %c0_58 = arith.constant 0 : index
      %48 = vector.load %arg7[%c0_57, %c0_58] : memref<2x16xf32, #tpu.memory_space<vmem>>, vector<2x16xf32>
      %cst_59 = arith.constant dense<0.000000e+00> : vector<2x1xf32>
      %49 = tpu.matmul %48, %45, %cst_59 {dimension_numbers = #tpu.dot_dimension_numbers<[1], [0], [0], [1], [0, 0, 1, 1], [], []>} : vector<2x16xf32>, vector<16x1xf32>, vector<2x1xf32> -> vector<2x1xf32>
      %cst_60 = arith.constant 0.013888889 : f32
      %50 = vector.broadcast %cst_60 : f32 to vector<2x1xf32>
      %51 = arith.mulf %47, %50 : vector<2x1xf32>
      %cst_61 = arith.constant 0.013888889 : f32
      %52 = vector.broadcast %cst_61 : f32 to vector<2x1xf32>
      %53 = arith.mulf %49, %52 : vector<2x1xf32>
      %54 = arith.mulf %51, %51 : vector<2x1xf32>
      %55 = arith.subf %53, %54 : vector<2x1xf32>
      %cst_62 = arith.constant 0.000000e+00 : f32
      %56 = vector.broadcast %cst_62 : f32 to vector<2x1xf32>
      %57 = arith.maximumf %55, %56 : vector<2x1xf32>
      %cst_63 = arith.constant 9.99999974E-6 : f32
      %58 = vector.broadcast %cst_63 : f32 to vector<2x1xf32>
      %59 = arith.addf %57, %58 : vector<2x1xf32>
      %60 = math.rsqrt %59 : vector<2x1xf32>
      %c0_64 = arith.constant 0 : index
      %c0_65 = arith.constant 0 : index
      %61 = vector.load %arg6[%c0_64, %c0_65] : memref<16x2xf32, #tpu.memory_space<vmem>>, vector<16x2xf32>
      %cst_66 = arith.constant dense<0.000000e+00> : vector<16x1xf32>
      %62 = tpu.matmul %61, %51, %cst_66 {dimension_numbers = #tpu.dot_dimension_numbers<[1], [0], [0], [1], [0, 0, 1, 1], [], []>} : vector<16x2xf32>, vector<2x1xf32>, vector<16x1xf32> -> vector<16x1xf32>
      %c0_67 = arith.constant 0 : index
      %c0_68 = arith.constant 0 : index
      %63 = vector.load %arg6[%c0_67, %c0_68] : memref<16x2xf32, #tpu.memory_space<vmem>>, vector<16x2xf32>
      %cst_69 = arith.constant dense<0.000000e+00> : vector<16x1xf32>
      %64 = tpu.matmul %63, %60, %cst_69 {dimension_numbers = #tpu.dot_dimension_numbers<[1], [0], [0], [1], [0, 0, 1, 1], [], []>} : vector<16x2xf32>, vector<2x1xf32>, vector<16x1xf32> -> vector<16x1xf32>
      %c0_70 = arith.constant 0 : index
      %c1_71 = arith.constant 1 : index
      %65 = vector.load %arg5[%c0_70, %c1_71] : memref<16x3xf32, #tpu.memory_space<vmem>>, vector<16x1xf32>
      %c0_72 = arith.constant 0 : index
      %c2_73 = arith.constant 2 : index
      %66 = vector.load %arg5[%c0_72, %c2_73] : memref<16x3xf32, #tpu.memory_space<vmem>>, vector<16x1xf32>
      %67 = arith.mulf %64, %65 : vector<16x1xf32>
      %68 = arith.mulf %62, %67 : vector<16x1xf32>
      %69 = arith.subf %66, %68 : vector<16x1xf32>
      %70 = vector.broadcast %67 : vector<16x1xf32> to vector<16x9xf32>
      %71 = arith.mulf %36, %70 : vector<16x9xf32>
      %72 = vector.broadcast %69 : vector<16x1xf32> to vector<16x9xf32>
      %73 = arith.addf %71, %72 : vector<16x9xf32>
      %cst_74 = arith.constant 0.000000e+00 : f32
      %74 = vector.broadcast %cst_74 : f32 to vector<16x9xf32>
      %75 = arith.maximumf %73, %74 : vector<16x9xf32>
      %c0_75 = arith.constant 0 : index
      %c0_76 = arith.constant 0 : index
      %c0_77 = arith.constant 0 : index
      %76 = vector.load %arg8[%c0_75, %c0_76, %c0_77] : memref<1x16x9xf32, #tpu.memory_space<vmem>>, vector<1x16x9xf32>
      %77 = vector.shape_cast %76 : vector<1x16x9xf32> to vector<16x9xf32>
      %78 = vector.shape_cast %75 : vector<16x9xf32> to vector<1x16x9xf32>
      tpu.vector_store %arg8[%c0_75, %c0_76, %c0_77], %78 {strides = array<i32>} : memref<1x16x9xf32, #tpu.memory_space<vmem>>, vector<1x16x9xf32>,
    } else {
    }
    return
  }
  func.func @transform_0(%arg0: i32, %arg1: i32) -> (i32, i32, i32, i32) {
    %c0_i32 = arith.constant 0 : i32
    %c0_i32_0 = arith.constant 0 : i32
    %c0_i32_1 = arith.constant 0 : i32
    return %arg0, %c0_i32, %c0_i32_0, %arg1 : i32, i32, i32, i32
  }
  func.func @transform_1(%arg0: i32, %arg1: i32) -> (i32, i32, i32, i32) {
    %c1_i32 = arith.constant 1 : i32
    %0 = arith.addi %arg1, %c1_i32 : i32
    %c1_i32_0 = arith.constant 1 : i32
    %1 = arith.muli %0, %c1_i32_0 : i32
    %c0_i32 = arith.constant 0 : i32
    %c0_i32_1 = arith.constant 0 : i32
    %c0_i32_2 = arith.constant 0 : i32
    return %arg0, %c0_i32, %c0_i32_1, %1 : i32, i32, i32, i32
  }
  func.func @transform_2(%arg0: i32, %arg1: i32) -> (i32, i32) {
    %c0_i32 = arith.constant 0 : i32
    %c0_i32_0 = arith.constant 0 : i32
    %c0_i32_1 = arith.constant 0 : i32
    return %c0_i32, %c0_i32_0 : i32, i32
  }
  func.func @transform_3(%arg0: i32, %arg1: i32) -> (i32, i32) {
    %c0_i32 = arith.constant 0 : i32
    %c0_i32_0 = arith.constant 0 : i32
    %c0_i32_1 = arith.constant 0 : i32
    return %c0_i32, %c0_i32_0 : i32, i32
  }
  func.func @transform_4(%arg0: i32, %arg1: i32) -> (i32, i32) {
    %c0_i32 = arith.constant 0 : i32
    %c0_i32_0 = arith.constant 0 : i32
    %c0_i32_1 = arith.constant 0 : i32
    return %c0_i32, %c0_i32_0 : i32, i32
  }
  func.func @transform_5(%arg0: i32, %arg1: i32) -> (i32, i32) {
    %c0_i32 = arith.constant 0 : i32
    %c0_i32_0 = arith.constant 0 : i32
    %c0_i32_1 = arith.constant 0 : i32
    return %c0_i32, %c0_i32_0 : i32, i32
  }
  func.func @transform_6(%arg0: i32, %arg1: i32) -> (i32, i32, i32) {
    %c0_i32 = arith.constant 0 : i32
    %c0_i32_0 = arith.constant 0 : i32
    %c0_i32_1 = arith.constant 0 : i32
    return %arg0, %c0_i32, %c0_i32_0 : i32, i32, i32
  }
}

</mosaic_0001>

<llo_original>
// kernel: conv_layer_forward.1
$region0: #{conv_layer_forward.1}
  #allocation0 [shape = 'u32[]', space=smem, size = 0x4, offset = 0x4, fixed_abs, tag = 'smem constant byte address 0x4 - core index']
  #allocation1 [shape = 'u32[144,128]{1,0:T(1,128)}', space=vmem, size = 0x12000, scoped, tag = 'internal scratch']
  #allocation2 [shape = 'f32[20,128]{1,0:T(8,128)}', space=vmem, size = 0x3000, scoped, tag = 'scratch operand']
  #allocation3 [shape = 'f32[1,16,128]{2,1,0:T(8,128)}', space=vmem, size = 0x2000, scoped, tag = 'scratch operand']
  #allocation4 [shape = 'f32[16,1]{1,0:T(8,128)}', space=vmem, size = 0x2000, scoped, tag = 'scratch operand']
  #allocation5 [shape = 'f32[16,1]{1,0:T(8,128)}', space=vmem, size = 0x2000, scoped, tag = 'scratch operand']
  %s0 = inlined_call_operand.vmem [shape: f32[2,2,4,256], index: 0, kind: input, shape index: {}, may-alias: {0,1}]
  %s1 = inlined_call_operand.vmem [shape: f32[2,2,4,256], index: 1, kind: input, shape index: {}, may-alias: {0,1}]
  %s2 = inlined_call_operand.vmem [shape: f32[16,20], index: 2, kind: input, shape index: {}]
  %s3 = inlined_call_operand.vmem [shape: f32[16,3], index: 3, kind: input, shape index: {}]
  %s4 = inlined_call_operand.vmem [shape: f32[16,2], index: 4, kind: input, shape index: {}]
  %s5 = inlined_call_operand.vmem [shape: f32[2,16], index: 5, kind: input, shape index: {}]
  %s6 = inlined_call_operand.vmem [shape: f32[2,16,9], index: 6, kind: output, shape index: {}]
  %s7 = sld [smem:[#allocation0]]
  $region147: #{conv_layer_forward.1} parent=0
    _
  %s9 = ssub.s32 1, %s7
  %s10 = scalar_select 0, %s9, %s7
  $region1: #{conv_layer_forward.1} parent=0
    #allocation6 [shape = 'u8[8192]{0}', space=vmem, size = 0x2000, scoped, tag = 'input window, operand 0']
    #allocation7 [shape = 'u8[8192]{0}', space=vmem, size = 0x2000, scoped, tag = 'input window, operand 1']
    loop: start=0, step=1, limit=4
    $region2: #{conv_layer_forward.1} parent=1 // loop_pre_header
      _
    $region3: #{conv_layer_forward.1} parent=1 // loop_header
      %s12 = sphi 0, %s16
      %p13 = scmp.ge.s32.totalorder %s12, 4
      %s19 = sphi 0, %s31
      %s20 = sphi 0, %s27
      %s21 = sphi 0, %s19
      %s22 = sphi 0, %s20
      %s23 = sphi 0, %s21
      %s24 = sphi 0, %s22
      %s36 = sphi 0, %s38
      %s39 = sphi 0, %s36
      %s40 = sphi 0, %s39
      %s56 = sphi 0, %s40
      %s66 = sphi 0, %s68
      %s69 = sphi 0, %s66
      %s70 = sphi 0, %s69
      %s86 = sphi 0, %s70
      %s90 = sphi 0, %s90
      %s92 = sphi 0, %s90
      %s93 = sphi 0, %s92
      %s107 = sphi 0, %s93
      %s111 = sphi 0, %s111
      %s113 = sphi 0, %s111
      %s114 = sphi 0, %s113
      %s128 = sphi 0, %s114
      %s132 = sphi 0, %s132
      %s134 = sphi 0, %s132
      %s135 = sphi 0, %s134
      %s149 = sphi 0, %s135
      %s153 = sphi 0, %s153
      %s155 = sphi 0, %s153
      %s156 = sphi 0, %s155
      %s170 = sphi 0, %s156
      %s176 = sphi 0, %s178
      %s179 = sphi 0, %s176
      %s180 = sphi 0, %s179
      %s196 = sphi 0, %s180
    $region4: #{conv_layer_forward.1} parent=1 // loop_header_branch
      %15 = sbr.rel (%p13) target = $region8
    $region5: #{conv_layer_forward.1} parent=1 // loop_body
      %s17 = ssub.s32 %s12, 1
      %s18 = ssub.s32 %s12, 2
      %s25 = sadd.s32 1, %s20
      %p26 = scmp.ge.s32.totalorder %s25, 1
      %s27 = scalar_select %p26, 0, %s25
      %s28 = sadd.s32 1, %s19
      %s29 = scalar_select %p26, %s28, %s19
      %p30 = scmp.ge.s32.totalorder %s29, 2
      %s31 = scalar_select %p30, 0, %s29
      %s32 = ssub.s32 %s19, %s31
      %s33 = ssub.s32 %s20, %s27
      %s34 = sor.u32 %s32, %s33
      %p35 = scmp.eq.s32.totalorder %s34, 0
      %s37 = sadd.s32 %s36, 1
      %s38 = scalar_select %p35, %s36, %s37
      %p41 = pneg %p35
      %p42 = scmp.eq.s32.totalorder %s12, 1
      %p43 = por %p41, %p42
      %p44 = scmp.ne.s32.totalorder %s36, %s39
      %p45 = scmp.eq.s32.totalorder %s12, 0
      %p46 = por %p44, %p45
      %p47 = scmp.ne.s32.totalorder %s36, %s39
      %p48 = scmp.eq.s32.totalorder %s17, 1
      %p49 = por %p47, %p48
      %p50 = scmp.ne.s32.totalorder %s39, %s40
      %p51 = scmp.eq.s32.totalorder %s17, 0
      %p52 = por %p50, %p51
      %p53 = scmp.ne.s32.totalorder %s39, %s40
      %p54 = scmp.eq.s32.totalorder %s18, 1
      %p55 = por %p53, %p54
      %p57 = scmp.ne.s32.totalorder %s40, %s56
      %p58 = scmp.eq.s32.totalorder %s18, 0
      %p59 = por %p57, %p58
      %s60 = sadd.s32 %s20, 1
      %s61 = sadd.s32 %s27, 1
      %s62 = ssub.s32 %s19, %s31
      %s63 = ssub.s32 %s60, %s61
      %s64 = sor.u32 %s62, %s63
      %p65 = scmp.eq.s32.totalorder %s64, 0
      %s67 = sadd.s32 %s66, 1
      %s68 = scalar_select %p65, %s66, %s67
      %p71 = pneg %p65
      %p72 = scmp.eq.s32.totalorder %s12, 1
      %p73 = por %p71, %p72
      %p74 = scmp.ne.s32.totalorder %s66, %s69
      %p75 = scmp.eq.s32.totalorder %s12, 0
      %p76 = por %p74, %p75
      %p77 = scmp.ne.s32.totalorder %s66, %s69
      %p78 = scmp.eq.s32.totalorder %s17, 1
      %p79 = por %p77, %p78
      %p80 = scmp.ne.s32.totalorder %s69, %s70
      %p81 = scmp.eq.s32.totalorder %s17, 0
      %p82 = por %p80, %p81
      %p83 = scmp.ne.s32.totalorder %s69, %s70
      %p84 = scmp.eq.s32.totalorder %s18, 1
      %p85 = por %p83, %p84
      %p87 = scmp.ne.s32.totalorder %s70, %s86
      %p88 = scmp.eq.s32.totalorder %s18, 0
      %p89 = por %p87, %p88
      %s91 = sadd.s32 %s90, 1
      %p94 = scmp.eq.s32.totalorder %s12, 1
      %p95 = scmp.ne.s32.totalorder %s90, %s92
      %p96 = scmp.eq.s32.totalorder %s12, 0
      %p97 = por %p95, %p96
      %p98 = scmp.ne.s32.totalorder %s90, %s92
      %p99 = scmp.eq.s32.totalorder %s17, 1
      %p100 = por %p98, %p99
      %p101 = scmp.ne.s32.totalorder %s92, %s93
      %p102 = scmp.eq.s32.totalorder %s17, 0
      %p103 = por %p101, %p102
      %p104 = scmp.ne.s32.totalorder %s92, %s93
      %p105 = scmp.eq.s32.totalorder %s18, 1
      %p106 = por %p104, %p105
      %p108 = scmp.ne.s32.totalorder %s93, %s107
      %p109 = scmp.eq.s32.totalorder %s18, 0
      %p110 = por %p108, %p109
      %s112 = sadd.s32 %s111, 1
      %p115 = scmp.eq.s32.totalorder %s12, 1
      %p116 = scmp.ne.s32.totalorder %s111, %s113
      %p117 = scmp.eq.s32.totalorder %s12, 0
      %p118 = por %p116, %p117
      %p119 = scmp.ne.s32.totalorder %s111, %s113
      %p120 = scmp.eq.s32.totalorder %s17, 1
      %p121 = por %p119, %p120
      %p122 = scmp.ne.s32.totalorder %s113, %s114
      %p123 = scmp.eq.s32.totalorder %s17, 0
      %p124 = por %p122, %p123
      %p125 = scmp.ne.s32.totalorder %s113, %s114
      %p126 = scmp.eq.s32.totalorder %s18, 1
      %p127 = por %p125, %p126
      %p129 = scmp.ne.s32.totalorder %s114, %s128
      %p130 = scmp.eq.s32.totalorder %s18, 0
      %p131 = por %p129, %p130
      %s133 = sadd.s32 %s132, 1
      %p136 = scmp.eq.s32.totalorder %s12, 1
      %p137 = scmp.ne.s32.totalorder %s132, %s134
      %p138 = scmp.eq.s32.totalorder %s12, 0
      %p139 = por %p137, %p138
      %p140 = scmp.ne.s32.totalorder %s132, %s134
      %p141 = scmp.eq.s32.totalorder %s17, 1
      %p142 = por %p140, %p141
      %p143 = scmp.ne.s32.totalorder %s134, %s135
      %p144 = scmp.eq.s32.totalorder %s17, 0
      %p145 = por %p143, %p144
      %p146 = scmp.ne.s32.totalorder %s134, %s135
      %p147 = scmp.eq.s32.totalorder %s18, 1
      %p148 = por %p146, %p147
      %p150 = scmp.ne.s32.totalorder %s135, %s149
      %p151 = scmp.eq.s32.totalorder %s18, 0
      %p152 = por %p150, %p151
      %s154 = sadd.s32 %s153, 1
      %p157 = scmp.eq.s32.totalorder %s12, 1
      %p158 = scmp.ne.s32.totalorder %s153, %s155
      %p159 = scmp.eq.s32.totalorder %s12, 0
      %p160 = por %p158, %p159
      %p161 = scmp.ne.s32.totalorder %s153, %s155
      %p162 = scmp.eq.s32.totalorder %s17, 1
      %p163 = por %p161, %p162
      %p164 = scmp.ne.s32.totalorder %s155, %s156
      %p165 = scmp.eq.s32.totalorder %s17, 0
      %p166 = por %p164, %p165
      %p167 = scmp.ne.s32.totalorder %s155, %s156
      %p168 = scmp.eq.s32.totalorder %s18, 1
      %p169 = por %p167, %p168
      %p171 = scmp.ne.s32.totalorder %s156, %s170
      %p172 = scmp.eq.s32.totalorder %s18, 0
      %p173 = por %p171, %p172
      %s174 = ssub.s32 %s19, %s31
      %p175 = scmp.eq.s32.totalorder %s174, 0
      %s177 = sadd.s32 %s176, 1
      %s178 = scalar_select %p175, %s176, %s177
      %p181 = pneg %p175
      %p182 = scmp.eq.s32.totalorder %s12, 1
      %p183 = por %p181, %p182
      %p184 = scmp.ne.s32.totalorder %s176, %s179
      %p185 = scmp.eq.s32.totalorder %s12, 0
      %p186 = por %p184, %p185
      %p187 = scmp.ne.s32.totalorder %s176, %s179
      %p188 = scmp.eq.s32.totalorder %s17, 1
      %p189 = por %p187, %p188
      %p190 = scmp.ne.s32.totalorder %s179, %s180
      %p191 = scmp.eq.s32.totalorder %s17, 0
      %p192 = por %p190, %p191
      %p193 = scmp.ne.s32.totalorder %s179, %s180
      %p194 = scmp.eq.s32.totalorder %s18, 1
      %p195 = por %p193, %p194
      %p197 = scmp.ne.s32.totalorder %s180, %s196
      %p198 = scmp.eq.s32.totalorder %s18, 0
      %p199 = por %p197, %p198
      %p200 = scmp.le.s32.totalorder 1, %s12
      %p201 = scmp.lt.s32.totalorder %s12, 3
      %p202 = pnand %p200, %p201
      %p203 = pneg %p202
      // Predicated region
      $region9: #{conv_layer_forward.1} parent=5 // pred_check
        _
      $region10: #{conv_layer_forward.1} parent=5 // pred_check_branch
        %205 = sbr.rel (%p202) target = $region12
      $region11: #{conv_layer_forward.1} parent=5 // pred_region
        %s206 = ssub.s32 %s12, 1
        // Predicated region
        $region13: #{conv_layer_forward.1} parent=11 // pred_check
          %p207 = pneg %p103
        $region14: #{conv_layer_forward.1} parent=11 // pred_check_branch
          %209 = sbr.rel (%p207) target = $region16
        $region15: #{conv_layer_forward.1} parent=11 // pred_region
          _
        $region16: #{conv_layer_forward.1} parent=11 // pred_fallthru
          _
        // Predicated region
        $region17: #{conv_layer_forward.1} parent=11 // pred_check
          %p210 = pneg %p124
        $region18: #{conv_layer_forward.1} parent=11 // pred_check_branch
          %212 = sbr.rel (%p210) target = $region20
        $region19: #{conv_layer_forward.1} parent=11 // pred_region
          _
        $region20: #{conv_layer_forward.1} parent=11 // pred_fallthru
          _
        // Predicated region
        $region21: #{conv_layer_forward.1} parent=11 // pred_check
          %p213 = pneg %p145
        $region22: #{conv_layer_forward.1} parent=11 // pred_check_branch
          %215 = sbr.rel (%p213) target = $region24
        $region23: #{conv_layer_forward.1} parent=11 // pred_region
          _
        $region24: #{conv_layer_forward.1} parent=11 // pred_fallthru
          _
        // Predicated region
        $region25: #{conv_layer_forward.1} parent=11 // pred_check
          %p216 = pneg %p166
        $region26: #{conv_layer_forward.1} parent=11 // pred_check_branch
          %218 = sbr.rel (%p216) target = $region28
        $region27: #{conv_layer_forward.1} parent=11 // pred_region
          _
        $region28: #{conv_layer_forward.1} parent=11 // pred_fallthru
          _
      $region12: #{conv_layer_forward.1} parent=5 // pred_fallthru
        _
      %p219 = scmp.lt.s32.totalorder %s12, 2
      // Predicated region
      $region29: #{conv_layer_forward.1} parent=5 // pred_check
        %p220 = pneg %p219
      $region30: #{conv_layer_forward.1} parent=5 // pred_check_branch
        %222 = sbr.rel (%p220) target = $region32
      $region31: #{conv_layer_forward.1} parent=5 // pred_region
        // Predicated region
        $region33: #{conv_layer_forward.1} parent=31 // pred_check
          %p223 = pneg %p46
        $region34: #{conv_layer_forward.1} parent=31 // pred_check_branch
          %225 = sbr.rel (%p223) target = $region36
        $region35: #{conv_layer_forward.1} parent=31 // pred_region
          %s226 = sand.u32 %s36, 1
          %s227 = sand.u32 %s36, 1
          %s228 = smul.addr %s227, 8
          %s229 = scalar_lea.vmem [#allocation6], %s228
          %s230 = smul.addr %s19, 4
          %s231 = sadd.s32 %s20, %s230
          %s232 = smul.addr %s231, 4
          %s233 = scalar_lea.vmem %s0, %s232
          // Predicated region
          $region37: #{conv_layer_forward.1} parent=35 // pred_check
            _
          $region38: #{conv_layer_forward.1} parent=35 // pred_check_branch
            %235 = sbr.rel (0) target = $region40
          $region39: #{conv_layer_forward.1} parent=35 // pred_region
            // Predicated region
            $region41: #{conv_layer_forward.1} parent=39 // pred_check
              _
            $region42: #{conv_layer_forward.1} parent=39 // pred_check_branch
              %237 = sbr.rel target = $region44
            $region43: #{conv_layer_forward.1} parent=39 // pred_region
              // Predicated region
              $region56: #{conv_layer_forward.1} parent=43 // pred_check
                _
              $region57: #{conv_layer_forward.1} parent=43 // pred_check_branch
                %255 = sbr.rel (0) target = $region59
              $region58: #{conv_layer_forward.1} parent=43 // pred_region
                loop: start=0, step=1, limit=1
                $region60: #{conv_layer_forward.1} parent=58 // loop_pre_header
                  _
                $region61: #{conv_layer_forward.1} parent=58 // loop_header
                  %s257 = sphi 0, %s261
                  %p258 = scmp.ge.s32.totalorder %s257, 1
                  %s262 = sphi %s233, %s233
                  %s263 = sphi %s229, %s229
                $region62: #{conv_layer_forward.1} parent=58 // loop_header_branch
                  %260 = sbr.rel (%p258) target = $region66
                $region63: #{conv_layer_forward.1} parent=58 // loop_body
                  _
                $region64: #{conv_layer_forward.1} parent=58 // loop_footer
                  %s261 = sadd.s32 1, %s257
                $region65: #{conv_layer_forward.1} parent=58 // loop_footer_branch
                  %256 = sbr.rel target = $region61
                $region66: #{conv_layer_forward.1} parent=58 // loop_exit
                  _
                %s265 = ssub.s32 16, 1
                loop: start=0, step=1, limit=1
                $region67: #{conv_layer_forward.1} parent=58 // loop_pre_header
                  _
                $region68: #{conv_layer_forward.1} parent=58 // loop_header
                  %s267 = sphi 0, %s271
                  %p268 = scmp.ge.s32.totalorder %s267, 1
                  %s272 = sphi %s233, %s233
                  %s273 = sphi %s229, %s229
                $region69: #{conv_layer_forward.1} parent=58 // loop_header_branch
                  %270 = sbr.rel (%p268) target = $region73
                $region70: #{conv_layer_forward.1} parent=58 // loop_body
                  %v274 = vld [vmem:[%s272] sm:%s265]
                  %275 = vst [vmem:[%s273] sm:%s265] %v274
                  %v276 = vld [vmem:[%s272 + $0x8] sm:%s265]
                  %277 = vst [vmem:[%s273 + $0x4] sm:%s265] %v276
                $region71: #{conv_layer_forward.1} parent=58 // loop_footer
                  %s271 = sadd.s32 1, %s267
                $region72: #{conv_layer_forward.1} parent=58 // loop_footer_branch
                  %266 = sbr.rel target = $region68
                $region73: #{conv_layer_forward.1} parent=58 // loop_exit
                  _
              $region59: #{conv_layer_forward.1} parent=43 // pred_fallthru
                _
            $region44: #{conv_layer_forward.1} parent=39 // pred_fallthru
              _
            // Predicated region
            $region45: #{conv_layer_forward.1} parent=39 // pred_check
              _
            $region46: #{conv_layer_forward.1} parent=39 // pred_check_branch
              %239 = sbr.rel (0) target = $region48
            $region47: #{conv_layer_forward.1} parent=39 // pred_region
              %s241 = ssub.s32 16, 1
              loop: start=0, step=1, limit=1
              $region49: #{conv_layer_forward.1} parent=47 // loop_pre_header
                _
              $region50: #{conv_layer_forward.1} parent=47 // loop_header
                %s243 = sphi 0, %s247
                %p244 = scmp.ge.s32.totalorder %s243, 1
                %s248 = sphi %s233, %s233
                %s249 = sphi %s229, %s229
              $region51: #{conv_layer_forward.1} parent=47 // loop_header_branch
                %246 = sbr.rel (%p244) target = $region55
              $region52: #{conv_layer_forward.1} parent=47 // loop_body
                %v250 = vld [vmem:[%s248] sm:%s241]
                %251 = vst [vmem:[%s249] sm:%s241] %v250
                %v252 = vld [vmem:[%s248 + $0x8] sm:%s241]
                %253 = vst [vmem:[%s249 + $0x4] sm:%s241] %v252
              $region53: #{conv_layer_forward.1} parent=47 // loop_footer
                %s247 = sadd.s32 1, %s243
              $region54: #{conv_layer_forward.1} parent=47 // loop_footer_branch
                %242 = sbr.rel target = $region50
              $region55: #{conv_layer_forward.1} parent=47 // loop_exit
                _
            $region48: #{conv_layer_forward.1} parent=39 // pred_fallthru
              _
          $region40: #{conv_layer_forward.1} parent=35 // pred_fallthru
            _
          %278 = vnop
        $region36: #{conv_layer_forward.1} parent=31 // pred_fallthru
          _
        // Predicated region
        $region74: #{conv_layer_forward.1} parent=31 // pred_check
          %p279 = pneg %p76
        $region75: #{conv_layer_forward.1} parent=31 // pred_check_branch
          %281 = sbr.rel (%p279) target = $region77
        $region76: #{conv_layer_forward.1} parent=31 // pred_region
          %s282 = sand.u32 %s66, 1
          %s283 = sand.u32 %s66, 1
          %s284 = smul.addr %s283, 8
          %s285 = scalar_lea.vmem [#allocation7], %s284
          %s286 = sadd.s32 %s20, 1
          %s287 = smul.addr %s19, 4
          %s288 = sadd.s32 %s286, %s287
          %s289 = smul.addr %s288, 4
          %s290 = scalar_lea.vmem %s1, %s289
          // Predicated region
          $region78: #{conv_layer_forward.1} parent=76 // pred_check
            _
          $region79: #{conv_layer_forward.1} parent=76 // pred_check_branch
            %292 = sbr.rel (0) target = $region81
          $region80: #{conv_layer_forward.1} parent=76 // pred_region
            // Predicated region
            $region82: #{conv_layer_forward.1} parent=80 // pred_check
              _
            $region83: #{conv_layer_forward.1} parent=80 // pred_check_branch
              %294 = sbr.rel target = $region85
            $region84: #{conv_layer_forward.1} parent=80 // pred_region
              // Predicated region
              $region97: #{conv_layer_forward.1} parent=84 // pred_check
                _
              $region98: #{conv_layer_forward.1} parent=84 // pred_check_branch
                %312 = sbr.rel (0) target = $region100
              $region99: #{conv_layer_forward.1} parent=84 // pred_region
                loop: start=0, step=1, limit=1
                $region101: #{conv_layer_forward.1} parent=99 // loop_pre_header
                  _
                $region102: #{conv_layer_forward.1} parent=99 // loop_header
                  %s314 = sphi 0, %s318
                  %p315 = scmp.ge.s32.totalorder %s314, 1
                  %s319 = sphi %s290, %s290
                  %s320 = sphi %s285, %s285
                $region103: #{conv_layer_forward.1} parent=99 // loop_header_branch
                  %317 = sbr.rel (%p315) target = $region107
                $region104: #{conv_layer_forward.1} parent=99 // loop_body
                  _
                $region105: #{conv_layer_forward.1} parent=99 // loop_footer
                  %s318 = sadd.s32 1, %s314
                $region106: #{conv_layer_forward.1} parent=99 // loop_footer_branch
                  %313 = sbr.rel target = $region102
                $region107: #{conv_layer_forward.1} parent=99 // loop_exit
                  _
                %s322 = ssub.s32 16, 1
                loop: start=0, step=1, limit=1
                $region108: #{conv_layer_forward.1} parent=99 // loop_pre_header
                  _
                $region109: #{conv_layer_forward.1} parent=99 // loop_header
                  %s324 = sphi 0, %s328
                  %p325 = scmp.ge.s32.totalorder %s324, 1
                  %s329 = sphi %s290, %s290
                  %s330 = sphi %s285, %s285
                $region110: #{conv_layer_forward.1} parent=99 // loop_header_branch
                  %327 = sbr.rel (%p325) target = $region114
                $region111: #{conv_layer_forward.1} parent=99 // loop_body
                  %v331 = vld [vmem:[%s329] sm:%s322]
                  %332 = vst [vmem:[%s330] sm:%s322] %v331
                  %v333 = vld [vmem:[%s329 + $0x8] sm:%s322]
                  %334 = vst [vmem:[%s330 + $0x4] sm:%s322] %v333
                $region112: #{conv_layer_forward.1} parent=99 // loop_footer
                  %s328 = sadd.s32 1, %s324
                $region113: #{conv_layer_forward.1} parent=99 // loop_footer_branch
                  %323 = sbr.rel target = $region109
                $region114: #{conv_layer_forward.1} parent=99 // loop_exit
                  _
              $region100: #{conv_layer_forward.1} parent=84 // pred_fallthru
                _
            $region85: #{conv_layer_forward.1} parent=80 // pred_fallthru
              _
            // Predicated region
            $region86: #{conv_layer_forward.1} parent=80 // pred_check
              _
            $region87: #{conv_layer_forward.1} parent=80 // pred_check_branch
              %296 = sbr.rel (0) target = $region89
            $region88: #{conv_layer_forward.1} parent=80 // pred_region
              %s298 = ssub.s32 16, 1
              loop: start=0, step=1, limit=1
              $region90: #{conv_layer_forward.1} parent=88 // loop_pre_header
                _
              $region91: #{conv_layer_forward.1} parent=88 // loop_header
                %s300 = sphi 0, %s304
                %p301 = scmp.ge.s32.totalorder %s300, 1
                %s305 = sphi %s290, %s290
                %s306 = sphi %s285, %s285
              $region92: #{conv_layer_forward.1} parent=88 // loop_header_branch
                %303 = sbr.rel (%p301) target = $region96
              $region93: #{conv_layer_forward.1} parent=88 // loop_body
                %v307 = vld [vmem:[%s305] sm:%s298]
                %308 = vst [vmem:[%s306] sm:%s298] %v307
                %v309 = vld [vmem:[%s305 + $0x8] sm:%s298]
                %310 = vst [vmem:[%s306 + $0x4] sm:%s298] %v309
              $region94: #{conv_layer_forward.1} parent=88 // loop_footer
                %s304 = sadd.s32 1, %s300
              $region95: #{conv_layer_forward.1} parent=88 // loop_footer_branch
                %299 = sbr.rel target = $region91
              $region96: #{conv_layer_forward.1} parent=88 // loop_exit
                _
            $region89: #{conv_layer_forward.1} parent=80 // pred_fallthru
              _
          $region81: #{conv_layer_forward.1} parent=76 // pred_fallthru
            _
          %335 = vnop
        $region77: #{conv_layer_forward.1} parent=31 // pred_fallthru
          _
      $region32: #{conv_layer_forward.1} parent=5 // pred_fallthru
        _
      %p336 = scmp.le.s32.totalorder 1, %s12
      %p337 = scmp.lt.s32.totalorder %s12, 3
      %p338 = pnand %p336, %p337
      %p339 = pneg %p338
      // Predicated region
      $region115: #{conv_layer_forward.1} parent=5 // pred_check
        _
      $region116: #{conv_layer_forward.1} parent=5 // pred_check_branch
        %341 = sbr.rel (%p338) target = $region118
      $region117: #{conv_layer_forward.1} parent=5 // pred_region
        %s342 = ssub.s32 %s12, 1
        %s343 = sand.u32 %s39, 1
        %s344 = sand.u32 %s39, 1
        %s345 = smul.addr %s344, 8
        %s346 = scalar_lea.vmem [#allocation6], %s345
        // Predicated region
        $region119: #{conv_layer_forward.1} parent=117 // pred_check
          %p347 = pneg %p52
        $region120: #{conv_layer_forward.1} parent=117 // pred_check_branch
          %349 = sbr.rel (%p347) target = $region122
        $region121: #{conv_layer_forward.1} parent=117 // pred_region
          _
        $region122: #{conv_layer_forward.1} parent=117 // pred_fallthru
          _
        %s350 = sand.u32 %s69, 1
        %s351 = sand.u32 %s69, 1
        %s352 = smul.addr %s351, 8
        %s353 = scalar_lea.vmem [#allocation7], %s352
        // Predicated region
        $region123: #{conv_layer_forward.1} parent=117 // pred_check
          %p354 = pneg %p82
        $region124: #{conv_layer_forward.1} parent=117 // pred_check_branch
          %356 = sbr.rel (%p354) target = $region126
        $region125: #{conv_layer_forward.1} parent=117 // pred_region
          _
        $region126: #{conv_layer_forward.1} parent=117 // pred_fallthru
          _
        %s357 = sand.u32 %s39, 1
        %s358 = sand.u32 %s39, 1
        %s359 = smul.addr %s358, 8
        %s360 = scalar_lea.vmem [#allocation6], %s359
        %p361 = pneg %p52
        %p362 = pneg %p49
        %s363 = sand.u32 %s69, 1
        %s364 = sand.u32 %s69, 1
        %s365 = smul.addr %s364, 8
        %s366 = scalar_lea.vmem [#allocation7], %s365
        %p367 = pneg %p82
        %p368 = pneg %p79
        %p369 = pneg %p103
        %p370 = pneg %p100
        %p371 = pneg %p124
        %p372 = pneg %p121
        %p373 = pneg %p145
        %p374 = pneg %p142
        %p375 = pneg %p166
        %p376 = pneg %p163
        %p377 = pneg %p192
        %p378 = pneg %p189
        %p379 = scmp.lt.s32.totalorder %s21, 1
        %s380 = scalar_select %p379, %s21, 1
        %s381 = smul.addr %s380, 2
        %s382 = smul.addr %s381, 8
        %s383 = scalar_lea.vmem %s6, %s382
        %s384 = sadd.s32 %s22, 1
        %p385 = scmp.lt.s32.totalorder %s21, 1
        %s386 = scalar_select %p385, %s21, 1
        %s387 = smul.addr %s386, 2
        %s388 = smul.addr %s387, 8
        %s389 = scalar_lea.vmem %s6, %s388
        %p390 = scmp.eq.s32.totalorder %s22, 0
        // Predicated region
        $region127: #{conv_layer_forward.1} parent=117 // pred_check
          %p391 = pneg %p390
        $region128: #{conv_layer_forward.1} parent=117 // pred_check_branch
          %393 = sbr.rel (%p391) target = $region130
        $region129: #{conv_layer_forward.1} parent=117 // pred_region
          %vm394 = vcmask 7168
          %395 = vst.msk [vmem:[#allocation4] sm:$0xff] %vm394, 0.0
          %396 = vst.msk [vmem:[#allocation4 + $0x8] sm:$0xff] %vm394, 0.0
          %397 = vst.msk [vmem:[#allocation5] sm:$0xff] %vm394, 0.0
          %398 = vst.msk [vmem:[#allocation5 + $0x8] sm:$0xff] %vm394, 0.0
        $region130: #{conv_layer_forward.1} parent=117 // pred_fallthru
          _
        %v399 = vld [vmem:[%s346] sm:$0xf]
        %400 = vst [vmem:[#allocation2] sm:$0xf] %v399
        %s401 = scalar_lea.vmem %s346, 4 [#allocation6]
        %v402 = vld [vmem:[%s401] sm:$0xf]
        %403 = vst [vmem:[#allocation2 + $0x4] sm:$0xf] %v402
        %v404 = vld [vmem:[%s346] sm:$0xf]
        %406 = vrot.lane.b32.xlu0 %v404, 127
        %v407 = vpop.permute.xlu0 %406
        %vm409 = vcmask 1035264
        %410 = vst.msk [vmem:[#allocation2 + $0x8] sm:$0xf] %vm409, %v407
        %v411 = vld [vmem:[%s353] sm:$0xf]
        %413 = vrot.lane.b32.xlu0 %v411, 127
        %v414 = vpop.permute.xlu0 %413
        %vm416 = vcmask 1044472
        %417 = vst.msk [vmem:[#allocation2 + $0x8] sm:$0xf] %vm416, %v414
        %v418 = vld [vmem:[%s401] sm:$0xf]
        %420 = vrot.lane.b32.xlu0 %v418, 127
        %v421 = vpop.permute.xlu0 %420
        %423 = vst.msk [vmem:[#allocation2 + $0xc] sm:$0xf] %vm409, %v421
        %s424 = scalar_lea.vmem %s353, 4 [#allocation7]
        %v425 = vld [vmem:[%s424] sm:$0xf]
        %427 = vrot.lane.b32.xlu0 %v425, 127
        %v428 = vpop.permute.xlu0 %427
        %430 = vst.msk [vmem:[#allocation2 + $0xc] sm:$0xf] %vm416, %v428
        %v431 = vld [vmem:[%s346] sm:$0xf]
        %433 = vrot.lane.b32.xlu0 %v431, 126
        %v434 = vpop.permute.xlu0 %433
        %vm436 = vcmask 1027072
        %437 = vst.msk [vmem:[#allocation2 + $0x10] sm:$0xf] %vm436, %v434
        %v438 = vld [vmem:[%s353] sm:$0xf]
        %440 = vrot.lane.b32.xlu0 %v438, 126
        %v441 = vpop.permute.xlu0 %440
        %vm443 = vcmask 1044464
        %444 = vst.msk [vmem:[#allocation2 + $0x10] sm:$0xf] %vm443, %v441
        %v445 = vld [vmem:[%s2] sm:$0xff]
        %v446 = vld [vmem:[%s2 + $0x8] sm:$0xff]
        %v447 = vld [vmem:[#allocation2] sm:$0xff]
        %v448 = vld [vmem:[#allocation2 + $0x8] sm:$0xff]
        %v449 = vld [vmem:[#allocation2 + $0x10] sm:$0xf]
        %v450 = vld [vmem:[%s3] sm:$0xff]
        %v451 = vld [vmem:[%s3 + $0x8] sm:$0xff]
        %453 = vset.pattern.permute.xlu0 0
        %454 = vperm.xlu0 %453, %v450
        %v455 = vpop.permute.xlu0 %454
        %458 = vset.pattern.permute.xlu0 0
        %459 = vperm.xlu0 %458, %v451
        %v460 = vpop.permute.xlu0 %459
        %vm462 = vcmask 162816
        %v464 = vsel %vm462, %v445, 0
        %v467 = vsel %vm462, %v446, 0
        %vm469 = vcmask 1043456
        %v471 = vsel %vm469, %v449, 0
        %473 = vmatprep.subr.mxu0 0.0
        %474 = vmatpush1.msra.mxu0 0.0
        %475 = vmatprep.subr.mxu0 0.0
        %476 = vmatpush1.msra.mxu0 0.0
        %477 = vmatprep.subr.mxu0 0.0
        %478 = vmatpush1.msra.mxu0 0.0
        %479 = vmatprep.subr.mxu0 0.0
        %480 = vmatpush1.msra.mxu0 0.0
        %481 = vmatprep.subr.mxu0 0.0
        %482 = vmatpush1.msra.mxu0 0.0
        %483 = vmatprep.subr.mxu0 0.0
        %484 = vmatpush1.msra.mxu0 0.0
        %485 = vmatprep.subr.mxu0 0.0
        %486 = vmatpush1.msra.mxu0 0.0
        %487 = vmatprep.subr.mxu0 0.0
        %488 = vmatpush1.msra.mxu0 0.0
        %489 = vmatprep.subr.mxu0 0.0
        %490 = vmatpush1.msra.mxu0 0.0
        %491 = vmatprep.subr.mxu0 0.0
        %492 = vmatpush1.msra.mxu0 0.0
        %493 = vmatprep.subr.mxu0 0.0
        %494 = vmatpush1.msra.mxu0 0.0
        %495 = vmatprep.subr.mxu0 0.0
        %496 = vmatpush1.msra.mxu0 0.0
        %497 = vmatprep.subr.mxu0 0.0
        %498 = vmatpush1.msra.mxu0 0.0
        %499 = vmatprep.subr.mxu0 0.0
        %500 = vmatpush1.msra.mxu0 %v471
        %501 = vmatprep.subr.mxu0 0.0
        %502 = vmatpush1.msra.mxu0 %v448
        %503 = vmatprep.subr.mxu0 0.0
        %504 = vmatpush1.msra.mxu0 %v447
        %505 = vmatprep.subr.mxu0 0.0
        %506 = vmatpush2.msra.mxu0 0.0
        %507 = vmatprep.subr.mxu0 0.0
        %508 = vmatpush2.msra.mxu0 0.0
        %509 = vmatprep.subr.mxu0 0.0
        %510 = vmatpush2.msra.mxu0 0.0
        %511 = vmatprep.subr.mxu0 0.0
        %512 = vmatpush2.msra.mxu0 0.0
        %513 = vmatprep.subr.mxu0 0.0
        %514 = vmatpush2.msra.mxu0 0.0
        %515 = vmatprep.subr.mxu0 0.0
        %516 = vmatpush2.msra.mxu0 0.0
        %517 = vmatprep.subr.mxu0 0.0
        %518 = vmatpush2.msra.mxu0 0.0
        %519 = vmatprep.subr.mxu0 0.0
        %520 = vmatpush2.msra.mxu0 0.0
        %521 = vmatprep.subr.mxu0 0.0
        %522 = vmatpush2.msra.mxu0 0.0
        %523 = vmatprep.subr.mxu0 0.0
        %524 = vmatpush2.msra.mxu0 0.0
        %525 = vmatprep.subr.mxu0 0.0
        %526 = vmatpush2.msra.mxu0 0.0
        %527 = vmatprep.subr.mxu0 0.0
        %528 = vmatpush2.msra.mxu0 0.0
        %529 = vmatprep.subr.mxu0 0.0
        %530 = vmatpush2.msra.mxu0 0.0
        %531 = vmatprep.subr.mxu0 0.0
        %532 = vmatpush2.msra.mxu0 0.0
        %533 = vmatprep.subr.mxu0 0.0
        %534 = vmatpush2.msra.mxu0 0.0
        %535 = vmatprep.subr.mxu0 0.0
        %536 = vmatpush2.msra.mxu0 0.0
        %537 = vmatprep.mubr.f32.mxu0 0.0
        %538 = vmatmul.mubr.f32.gmra.mxu0 %v464
        %v539 = vpop.f32.mrf.mxu0
        %v540 = vadd.f32 %v455, %v539
        %v541 = vpop.f32.mrf.mxu0
        %542 = vmatprep.mubr.f32.mxu0 0.0
        %543 = vmatmul.mubr.f32.gmra.mxu0 %v467
        %v544 = vpop.f32.mrf.mxu0
        %v545 = vadd.f32 %v460, %v544
        %v546 = vpop.f32.mrf.mxu0
        %547 = vdwg.mxu0
        // Predicated region
        $region131: #{conv_layer_forward.1} parent=117 // pred_check
          %p548 = pneg %p390
        $region132: #{conv_layer_forward.1} parent=117 // pred_check_branch
          %550 = sbr.rel (%p548) target = $region134
        $region133: #{conv_layer_forward.1} parent=117 // pred_region
          %v551 = vld [vmem:[#allocation4] sm:$0xff]
          %v552 = vld [vmem:[#allocation4 + $0x8] sm:$0xff]
          %vm553 = vcmask 72704
          %v554 = vsel %vm553, %v540, 0.0
          %555 = vadd.xlane.f32.xlu0 %v554
          %v556 = vpop.xlane.xlu0 %555
          %v557 = vsel %vm553, %v545, 0.0
          %558 = vadd.xlane.f32.xlu0 %v557
          %v559 = vpop.xlane.xlu0 %558
          %v560 = vadd.f32 %v551, %v556
          %v561 = vadd.f32 %v552, %v559
          %v562 = vld [vmem:[#allocation5] sm:$0xff]
          %v563 = vld [vmem:[#allocation5 + $0x8] sm:$0xff]
          %v564 = vmul.f32 %v540, %v540
          %v565 = vmul.f32 %v545, %v545
          %v566 = vsel %vm553, %v564, 0.0
          %567 = vadd.xlane.f32.xlu0 %v566
          %v568 = vpop.xlane.xlu0 %567
          %v569 = vsel %vm553, %v565, 0.0
          %570 = vadd.xlane.f32.xlu0 %v569
          %v571 = vpop.xlane.xlu0 %570
          %v572 = vadd.f32 %v562, %v568
          %v573 = vadd.f32 %v563, %v571
          %v574 = vld [vmem:[%s5] sm:$0x3]
          %vm575 = vcmask 130048
          %v577 = vsel %vm575, %v574, 0
          %579 = vmatprep.subr.mxu0 0.0
          %580 = vmatpush1.msra.mxu0 0.0
          %581 = vmatprep.subr.mxu0 0.0
          %582 = vmatpush1.msra.mxu0 0.0
          %583 = vmatprep.subr.mxu0 0.0
          %584 = vmatpush1.msra.mxu0 0.0
          %585 = vmatprep.subr.mxu0 0.0
          %586 = vmatpush1.msra.mxu0 0.0
          %587 = vmatprep.subr.mxu0 0.0
          %588 = vmatpush1.msra.mxu0 0.0
          %589 = vmatprep.subr.mxu0 0.0
          %590 = vmatpush1.msra.mxu0 0.0
          %591 = vmatprep.subr.mxu0 0.0
          %592 = vmatpush1.msra.mxu0 0.0
          %593 = vmatprep.subr.mxu0 0.0
          %594 = vmatpush1.msra.mxu0 0.0
          %595 = vmatprep.subr.mxu0 0.0
          %596 = vmatpush1.msra.mxu0 0.0
          %597 = vmatprep.subr.mxu0 0.0
          %598 = vmatpush1.msra.mxu0 0.0
          %599 = vmatprep.subr.mxu0 0.0
          %600 = vmatpush1.msra.mxu0 0.0
          %601 = vmatprep.subr.mxu0 0.0
          %602 = vmatpush1.msra.mxu0 0.0
          %603 = vmatprep.subr.mxu0 0.0
          %604 = vmatpush1.msra.mxu0 0.0
          %605 = vmatprep.subr.mxu0 0.0
          %606 = vmatpush1.msra.mxu0 0.0
          %607 = vmatprep.subr.mxu0 0.0
          %608 = vmatpush1.msra.mxu0 %v561
          %609 = vmatprep.subr.mxu0 0.0
          %610 = vmatpush1.msra.mxu0 %v560
          %611 = vmatprep.subr.mxu0 0.0
          %612 = vmatpush2.msra.mxu0 0.0
          %613 = vmatprep.subr.mxu0 0.0
          %614 = vmatpush2.msra.mxu0 0.0
          %615 = vmatprep.subr.mxu0 0.0
          %616 = vmatpush2.msra.mxu0 0.0
          %617 = vmatprep.subr.mxu0 0.0
          %618 = vmatpush2.msra.mxu0 0.0
          %619 = vmatprep.subr.mxu0 0.0
          %620 = vmatpush2.msra.mxu0 0.0
          %621 = vmatprep.subr.mxu0 0.0
          %622 = vmatpush2.msra.mxu0 0.0
          %623 = vmatprep.subr.mxu0 0.0
          %624 = vmatpush2.msra.mxu0 0.0
          %625 = vmatprep.subr.mxu0 0.0
          %626 = vmatpush2.msra.mxu0 0.0
          %627 = vmatprep.subr.mxu0 0.0
          %628 = vmatpush2.msra.mxu0 0.0
          %629 = vmatprep.subr.mxu0 0.0
          %630 = vmatpush2.msra.mxu0 0.0
          %631 = vmatprep.subr.mxu0 0.0
          %632 = vmatpush2.msra.mxu0 0.0
          %633 = vmatprep.subr.mxu0 0.0
          %634 = vmatpush2.msra.mxu0 0.0
          %635 = vmatprep.subr.mxu0 0.0
          %636 = vmatpush2.msra.mxu0 0.0
          %637 = vmatprep.subr.mxu0 0.0
          %638 = vmatpush2.msra.mxu0 0.0
          %639 = vmatprep.subr.mxu0 0.0
          %640 = vmatpush2.msra.mxu0 0.0
          %641 = vmatprep.subr.mxu0 0.0
          %642 = vmatpush2.msra.mxu0 0.0
          %643 = vmatprep.mubr.f32.mxu0 0.0
          %644 = vmatmul.mubr.f32.gmra.mxu0 %v577
          %v645 = vpop.f32.mrf.mxu0
          %v646 = vadd.f32 0.0, %v645
          %v647 = vpop.f32.mrf.mxu0
          %648 = vdwg.mxu0
          %649 = vmatprep.subr.mxu0 0.0
          %650 = vmatpush1.msra.mxu0 0.0
          %651 = vmatprep.subr.mxu0 0.0
          %652 = vmatpush1.msra.mxu0 0.0
          %653 = vmatprep.subr.mxu0 0.0
          %654 = vmatpush1.msra.mxu0 0.0
          %655 = vmatprep.subr.mxu0 0.0
          %656 = vmatpush1.msra.mxu0 0.0
          %657 = vmatprep.subr.mxu0 0.0
          %658 = vmatpush1.msra.mxu0 0.0
          %659 = vmatprep.subr.mxu0 0.0
          %660 = vmatpush1.msra.mxu0 0.0
          %661 = vmatprep.subr.mxu0 0.0
          %662 = vmatpush1.msra.mxu0 0.0
          %663 = vmatprep.subr.mxu0 0.0
          %664 = vmatpush1.msra.mxu0 0.0
          %665 = vmatprep.subr.mxu0 0.0
          %666 = vmatpush1.msra.mxu0 0.0
          %667 = vmatprep.subr.mxu0 0.0
          %668 = vmatpush1.msra.mxu0 0.0
          %669 = vmatprep.subr.mxu0 0.0
          %670 = vmatpush1.msra.mxu0 0.0
          %671 = vmatprep.subr.mxu0 0.0
          %672 = vmatpush1.msra.mxu0 0.0
          %673 = vmatprep.subr.mxu0 0.0
          %674 = vmatpush1.msra.mxu0 0.0
          %675 = vmatprep.subr.mxu0 0.0
          %676 = vmatpush1.msra.mxu0 0.0
          %677 = vmatprep.subr.mxu0 0.0
          %678 = vmatpush1.msra.mxu0 %v573
          %679 = vmatprep.subr.mxu0 0.0
          %680 = vmatpush1.msra.mxu0 %v572
          %681 = vmatprep.subr.mxu0 0.0
          %682 = vmatpush2.msra.mxu0 0.0
          %683 = vmatprep.subr.mxu0 0.0
          %684 = vmatpush2.msra.mxu0 0.0
          %685 = vmatprep.subr.mxu0 0.0
          %686 = vmatpush2.msra.mxu0 0.0
          %687 = vmatprep.subr.mxu0 0.0
          %688 = vmatpush2.msra.mxu0 0.0
          %689 = vmatprep.subr.mxu0 0.0
          %690 = vmatpush2.msra.mxu0 0.0
          %691 = vmatprep.subr.mxu0 0.0
          %692 = vmatpush2.msra.mxu0 0.0
          %693 = vmatprep.subr.mxu0 0.0
          %694 = vmatpush2.msra.mxu0 0.0
          %695 = vmatprep.subr.mxu0 0.0
          %696 = vmatpush2.msra.mxu0 0.0
          %697 = vmatprep.subr.mxu0 0.0
          %698 = vmatpush2.msra.mxu0 0.0
          %699 = vmatprep.subr.mxu0 0.0
          %700 = vmatpush2.msra.mxu0 0.0
          %701 = vmatprep.subr.mxu0 0.0
          %702 = vmatpush2.msra.mxu0 0.0
          %703 = vmatprep.subr.mxu0 0.0
          %704 = vmatpush2.msra.mxu0 0.0
          %705 = vmatprep.subr.mxu0 0.0
          %706 = vmatpush2.msra.mxu0 0.0
          %707 = vmatprep.subr.mxu0 0.0
          %708 = vmatpush2.msra.mxu0 0.0
          %709 = vmatprep.subr.mxu0 0.0
          %710 = vmatpush2.msra.mxu0 0.0
          %711 = vmatprep.subr.mxu0 0.0
          %712 = vmatpush2.msra.mxu0 0.0
          %713 = vmatprep.mubr.f32.mxu0 0.0
          %714 = vmatmul.mubr.f32.gmra.mxu0 %v577
          %v715 = vpop.f32.mrf.mxu0
          %v716 = vadd.f32 0.0, %v715
          %v717 = vpop.f32.mrf.mxu0
          %718 = vdwg.mxu0
          %v719 = vmul.f32 %v646, 0.013888889
          %v720 = vmul.f32 %v716, 0.013888889
          %v721 = vmul.f32 %v719, %v719
          %v722 = vsub.f32 %v720, %v721
          %v723 = vmax.f32 %v722, 0.0
          %v724 = vadd.f32 %v723, 1e-05
          %v725 = vrsqrt.pop %v724
          %v726 = vld [vmem:[%s4] sm:$0xff]
          %v727 = vld [vmem:[%s4 + $0x8] sm:$0xff]
          %vm728 = vcmask 15360
          %v730 = vsel %vm728, %v726, 0
          %v733 = vsel %vm728, %v727, 0
          %vm735 = vcmask 1041408
          %v737 = vsel %vm735, %v719, 0
          %739 = vmatprep.subr.mxu0 0.0
          %740 = vmatpush1.msra.mxu0 0.0
          %741 = vmatprep.subr.mxu0 0.0
          %742 = vmatpush1.msra.mxu0 0.0
          %743 = vmatprep.subr.mxu0 0.0
          %744 = vmatpush1.msra.mxu0 0.0
          %745 = vmatprep.subr.mxu0 0.0
          %746 = vmatpush1.msra.mxu0 0.0
          %747 = vmatprep.subr.mxu0 0.0
          %748 = vmatpush1.msra.mxu0 0.0
          %749 = vmatprep.subr.mxu0 0.0
          %750 = vmatpush1.msra.mxu0 0.0
          %751 = vmatprep.subr.mxu0 0.0
          %752 = vmatpush1.msra.mxu0 0.0
          %753 = vmatprep.subr.mxu0 0.0
          %754 = vmatpush1.msra.mxu0 0.0
          %755 = vmatprep.subr.mxu0 0.0
          %756 = vmatpush1.msra.mxu0 0.0
          %757 = vmatprep.subr.mxu0 0.0
          %758 = vmatpush1.msra.mxu0 0.0
          %759 = vmatprep.subr.mxu0 0.0
          %760 = vmatpush1.msra.mxu0 0.0
          %761 = vmatprep.subr.mxu0 0.0
          %762 = vmatpush1.msra.mxu0 0.0
          %763 = vmatprep.subr.mxu0 0.0
          %764 = vmatpush1.msra.mxu0 0.0
          %765 = vmatprep.subr.mxu0 0.0
          %766 = vmatpush1.msra.mxu0 0.0
          %767 = vmatprep.subr.mxu0 0.0
          %768 = vmatpush1.msra.mxu0 0.0
          %769 = vmatprep.subr.mxu0 0.0
          %770 = vmatpush1.msra.mxu0 %v737
          %771 = vmatprep.subr.mxu0 0.0
          %772 = vmatpush2.msra.mxu0 0.0
          %773 = vmatprep.subr.mxu0 0.0
          %774 = vmatpush2.msra.mxu0 0.0
          %775 = vmatprep.subr.mxu0 0.0
          %776 = vmatpush2.msra.mxu0 0.0
          %777 = vmatprep.subr.mxu0 0.0
          %778 = vmatpush2.msra.mxu0 0.0
          %779 = vmatprep.subr.mxu0 0.0
          %780 = vmatpush2.msra.mxu0 0.0
          %781 = vmatprep.subr.mxu0 0.0
          %782 = vmatpush2.msra.mxu0 0.0
          %783 = vmatprep.subr.mxu0 0.0
          %784 = vmatpush2.msra.mxu0 0.0
          %785 = vmatprep.subr.mxu0 0.0
          %786 = vmatpush2.msra.mxu0 0.0
          %787 = vmatprep.subr.mxu0 0.0
          %788 = vmatpush2.msra.mxu0 0.0
          %789 = vmatprep.subr.mxu0 0.0
          %790 = vmatpush2.msra.mxu0 0.0
          %791 = vmatprep.subr.mxu0 0.0
          %792 = vmatpush2.msra.mxu0 0.0
          %793 = vmatprep.subr.mxu0 0.0
          %794 = vmatpush2.msra.mxu0 0.0
          %795 = vmatprep.subr.mxu0 0.0
          %796 = vmatpush2.msra.mxu0 0.0
          %797 = vmatprep.subr.mxu0 0.0
          %798 = vmatpush2.msra.mxu0 0.0
          %799 = vmatprep.subr.mxu0 0.0
          %800 = vmatpush2.msra.mxu0 0.0
          %801 = vmatprep.subr.mxu0 0.0
          %802 = vmatpush2.msra.mxu0 0.0
          %803 = vmatprep.mubr.f32.mxu0 0.0
          %804 = vmatmul.mubr.f32.gmra.mxu0 %v730
          %v805 = vpop.f32.mrf.mxu0
          %v806 = vadd.f32 0.0, %v805
          %v807 = vpop.f32.mrf.mxu0
          %808 = vmatprep.mubr.f32.mxu0 0.0
          %809 = vmatmul.mubr.f32.gmra.mxu0 %v733
          %v810 = vpop.f32.mrf.mxu0
          %v811 = vadd.f32 0.0, %v810
          %v812 = vpop.f32.mrf.mxu0
          %813 = vdwg.mxu0
          %v815 = vsel %vm735, %v725, 0
          %817 = vmatprep.subr.mxu0 0.0
          %818 = vmatpush1.msra.mxu0 0.0
          %819 = vmatprep.subr.mxu0 0.0
          %820 = vmatpush1.msra.mxu0 0.0
          %821 = vmatprep.subr.mxu0 0.0
          %822 = vmatpush1.msra.mxu0 0.0
          %823 = vmatprep.subr.mxu0 0.0
          %824 = vmatpush1.msra.mxu0 0.0
          %825 = vmatprep.subr.mxu0 0.0
          %826 = vmatpush1.msra.mxu0 0.0
          %827 = vmatprep.subr.mxu0 0.0
          %828 = vmatpush1.msra.mxu0 0.0
          %829 = vmatprep.subr.mxu0 0.0
          %830 = vmatpush1.msra.mxu0 0.0
          %831 = vmatprep.subr.mxu0 0.0
          %832 = vmatpush1.msra.mxu0 0.0
          %833 = vmatprep.subr.mxu0 0.0
          %834 = vmatpush1.msra.mxu0 0.0
          %835 = vmatprep.subr.mxu0 0.0
          %836 = vmatpush1.msra.mxu0 0.0
          %837 = vmatprep.subr.mxu0 0.0
          %838 = vmatpush1.msra.mxu0 0.0
          %839 = vmatprep.subr.mxu0 0.0
          %840 = vmatpush1.msra.mxu0 0.0
          %841 = vmatprep.subr.mxu0 0.0
          %842 = vmatpush1.msra.mxu0 0.0
          %843 = vmatprep.subr.mxu0 0.0
          %844 = vmatpush1.msra.mxu0 0.0
          %845 = vmatprep.subr.mxu0 0.0
          %846 = vmatpush1.msra.mxu0 0.0
          %847 = vmatprep.subr.mxu0 0.0
          %848 = vmatpush1.msra.mxu0 %v815
          %849 = vmatprep.subr.mxu0 0.0
          %850 = vmatpush2.msra.mxu0 0.0
          %851 = vmatprep.subr.mxu0 0.0
          %852 = vmatpush2.msra.mxu0 0.0
          %853 = vmatprep.subr.mxu0 0.0
          %854 = vmatpush2.msra.mxu0 0.0
          %855 = vmatprep.subr.mxu0 0.0
          %856 = vmatpush2.msra.mxu0 0.0
          %857 = vmatprep.subr.mxu0 0.0
          %858 = vmatpush2.msra.mxu0 0.0
          %859 = vmatprep.subr.mxu0 0.0
          %860 = vmatpush2.msra.mxu0 0.0
          %861 = vmatprep.subr.mxu0 0.0
          %862 = vmatpush2.msra.mxu0 0.0
          %863 = vmatprep.subr.mxu0 0.0
          %864 = vmatpush2.msra.mxu0 0.0
          %865 = vmatprep.subr.mxu0 0.0
          %866 = vmatpush2.msra.mxu0 0.0
          %867 = vmatprep.subr.mxu0 0.0
          %868 = vmatpush2.msra.mxu0 0.0
          %869 = vmatprep.subr.mxu0 0.0
          %870 = vmatpush2.msra.mxu0 0.0
          %871 = vmatprep.subr.mxu0 0.0
          %872 = vmatpush2.msra.mxu0 0.0
          %873 = vmatprep.subr.mxu0 0.0
          %874 = vmatpush2.msra.mxu0 0.0
          %875 = vmatprep.subr.mxu0 0.0
          %876 = vmatpush2.msra.mxu0 0.0
          %877 = vmatprep.subr.mxu0 0.0
          %878 = vmatpush2.msra.mxu0 0.0
          %879 = vmatprep.subr.mxu0 0.0
          %880 = vmatpush2.msra.mxu0 0.0
          %881 = vmatprep.mubr.f32.mxu0 0.0
          %882 = vmatmul.mubr.f32.gmra.mxu0 %v730
          %v883 = vpop.f32.mrf.mxu0
          %v884 = vadd.f32 0.0, %v883
          %v885 = vpop.f32.mrf.mxu0
          %886 = vmatprep.mubr.f32.mxu0 0.0
          %887 = vmatmul.mubr.f32.gmra.mxu0 %v733
          %v888 = vpop.f32.mrf.mxu0
          %v889 = vadd.f32 0.0, %v888
          %v890 = vpop.f32.mrf.mxu0
          %891 = vdwg.mxu0
          %v892 = vld [vmem:[%s3] sm:$0xff]
          %v893 = vld [vmem:[%s3 + $0x8] sm:$0xff]
          %896 = vrot.lane.b32.xlu0 %v892, 127
          %v897 = vpop.permute.xlu0 %896
          %898 = vrot.lane.b32.xlu0 %v893, 127
          %v899 = vpop.permute.xlu0 %898
          %v902 = vmul.f32 %v884, %v897
          %v903 = vmul.f32 %v889, %v899
          %v904 = vmul.f32 %v806, %v902
          %v905 = vmul.f32 %v811, %v903
          %908 = vrot.lane.b32.xlu0 %v904, 2
          %v909 = vpop.permute.xlu0 %908
          %910 = vrot.lane.b32.xlu0 %v905, 2
          %v911 = vpop.permute.xlu0 %910
          %v914 = vsub.f32 %v892, %v909
          %v915 = vsub.f32 %v893, %v911
          %917 = vset.pattern.permute.xlu0 0
          %918 = vperm.xlu0 %917, %v902
          %v919 = vpop.permute.xlu0 %918
          %922 = vset.pattern.permute.xlu0 0
          %923 = vperm.xlu0 %922, %v903
          %v924 = vpop.permute.xlu0 %923
          %v926 = vmul.f32 %v540, %v919
          %v927 = vmul.f32 %v545, %v924
          %929 = vset.pattern.permute.xlu0 2
          %930 = vperm.xlu0 %929, %v914
          %v931 = vpop.permute.xlu0 %930
          %934 = vset.pattern.permute.xlu0 2
          %935 = vperm.xlu0 %934, %v915
          %v936 = vpop.permute.xlu0 %935
          %v938 = vadd.f32 %v926, %v931
          %v939 = vadd.f32 %v927, %v936
          %v940 = vmax.f32 %v938, 0.0
          %v941 = vmax.f32 %v939, 0.0
          %942 = vst.msk [vmem:[%s389] sm:$0xff] %vm553, %v940
          %943 = vst.msk [vmem:[%s389 + $0x8] sm:$0xff] %vm553, %v941
        $region134: #{conv_layer_forward.1} parent=117 // pred_fallthru
          _
        %p944 = scmp.lt.s32.totalorder %s21, 1
        %s945 = scalar_select %p944, %s21, 1
        %s946 = smul.addr %s945, 2
        %s947 = smul.addr %s946, 8
        %s948 = scalar_lea.vmem %s6, %s947
        // Predicated region
        $region135: #{conv_layer_forward.1} parent=117 // pred_check
          %p949 = pneg %p189
        $region136: #{conv_layer_forward.1} parent=117 // pred_check_branch
          %951 = sbr.rel (%p949) target = $region138
        $region137: #{conv_layer_forward.1} parent=117 // pred_region
          _
        $region138: #{conv_layer_forward.1} parent=117 // pred_fallthru
          _
      $region118: #{conv_layer_forward.1} parent=5 // pred_fallthru
        _
      %p952 = scmp.le.s32.totalorder 2, %s12
      // Predicated region
      $region139: #{conv_layer_forward.1} parent=5 // pred_check
        %p953 = pneg %p952
      $region140: #{conv_layer_forward.1} parent=5 // pred_check_branch
        %955 = sbr.rel (%p953) target = $region142
      $region141: #{conv_layer_forward.1} parent=5 // pred_region
        %s956 = ssub.s32 %s12, 2
        // Predicated region
        $region143: #{conv_layer_forward.1} parent=141 // pred_check
          %p957 = pneg %p195
        $region144: #{conv_layer_forward.1} parent=141 // pred_check_branch
          %959 = sbr.rel (%p957) target = $region146
        $region145: #{conv_layer_forward.1} parent=141 // pred_region
          %p960 = scmp.lt.s32.totalorder %s23, 1
          %s961 = scalar_select %p960, %s23, 1
          %s962 = smul.addr %s961, 2
          %s963 = smul.addr %s962, 8
          %s964 = scalar_lea.vmem %s6, %s963
        $region146: #{conv_layer_forward.1} parent=141 // pred_fallthru
          _
      $region142: #{conv_layer_forward.1} parent=5 // pred_fallthru
        _
    $region6: #{conv_layer_forward.1} parent=1 // loop_footer
      %s16 = sadd.s32 1, %s12
    $region7: #{conv_layer_forward.1} parent=1 // loop_footer_branch
      %11 = sbr.rel target = $region3
    $region8: #{conv_layer_forward.1} parent=1 // loop_exit
      _

</llo_original>
